<compile_context>
chip_gen: v7x
topology: tpu7x:2x2x1
jax: 0.10.0
libtpu: 0.0.40
codegen_flags: <defaults>
</compile_context>

<pallas_src>
import functools

import jax
import jax.numpy as jnp
from jax import lax
from jax.experimental import pallas as pl
from jax.experimental.pallas import tpu as pltpu


def _default_vmem_limit():
    """Per-generation scoped-VMEM budget: ~96 MiB on v5e/v6e, ~44 MiB on v7x."""
    cap = None
    try:
        cap = getattr(pltpu.get_tpu_info(), "vmem_capacity_bytes", None)
    except Exception:  # pragma: no cover - CPU / interpret fallbacks
        cap = None
    if not cap:
        cap = 64 * 1024 * 1024  # conservative (v7x per-core VMEM)
    return max(32 * 1024 * 1024, min(cap * 3 // 4, cap - 20 * 1024 * 1024))


_VMEM_LIMIT = int(_default_vmem_limit())


def _tile(dim, target):
    """Largest (8,128)-friendly tile <= target that divides dim, else full dim."""
    if dim <= target:
        return dim
    t = target
    while dim % t != 0:
        t //= 2
        if t < 128:
            return dim  # full extent is always a legal block shape
    return t


# ---------------------------------------------------------------------------
# 1) Tiled in-projection:  y = x @ w.T + b   (bf16 operands, f32 accumulation,
#    bf16 output).  f32 accumulator scratch kept because output dtype is bf16.
# ---------------------------------------------------------------------------

def _linear_kernel(x_ref, w_ref, b_ref, o_ref, acc_ref):
    @pl.when(pl.program_id(2) == 0)
    def _():
        acc_ref[...] = jnp.zeros(acc_ref.shape, acc_ref.dtype)

    # w is fed untransposed (N, K); contract on K directly (no transpose).
    acc_ref[...] += lax.dot_general(
        x_ref[...], w_ref[...],
        dimension_numbers=(((1,), (1,)), ((), ())),
        preferred_element_type=jnp.float32)

    @pl.when(pl.program_id(2) == pl.num_programs(2) - 1)
    def _():
        o_ref[...] = (acc_ref[...] + b_ref[...]).astype(o_ref.dtype)


def linear_pallas(x, w, b, *, tm=512, tn=512, tk=1024):
    """F.linear: x (M, K) bf16, w (N, K) bf16, b (N,) f32 -> (M, N) bf16."""
    M, K = x.shape
    N = w.shape[0]
    bm, bn, bk = _tile(M, tm), _tile(N, tn), _tile(K, tk)
    return pl.pallas_call(
        _linear_kernel,
        out_shape=jax.ShapeDtypeStruct((M, N), jnp.bfloat16),
        grid=(M // bm, N // bn, K // bk),
        in_specs=[
            pl.BlockSpec((bm, bk), lambda i, j, k: (i, k)),
            pl.BlockSpec((bn, bk), lambda i, j, k: (j, k)),
            pl.BlockSpec((1, bn), lambda i, j, k: (0, j)),
        ],
        out_specs=pl.BlockSpec((bm, bn), lambda i, j, k: (i, j)),
        scratch_shapes=[pltpu.VMEM((bm, bn), jnp.float32)],
        compiler_params=pltpu.CompilerParams(
            dimension_semantics=("parallel", "parallel", "arbitrary"),
            vmem_limit_bytes=_VMEM_LIMIT),
    )(x, w, b.reshape(1, N))


def _qkv_specs(L, threeE, tq, tk, q_map, k_map, v_map, full_map):
    """Plane-split Q/K/V specs when E % 128 == 0, else full-3E fallback."""
    E = threeE // 3
    if E % 128 == 0:
        return ([pl.BlockSpec((1, tq, E), q_map),
                 pl.BlockSpec((1, tk, E), k_map),
                 pl.BlockSpec((1, tk, E), v_map)], 0, 0, 0)
    # Fallback: same full-width blocks, kernels slice by column offset.
    return ([pl.BlockSpec((1, tq, threeE), full_map),
             pl.BlockSpec((1, tk, threeE), lambda *a: k_map(*a)[:2] + (0,)),
             pl.BlockSpec((1, tk, threeE), lambda *a: v_map(*a)[:2] + (0,))],
            0, E, 2 * E)


# ---------------------------------------------------------------------------
# 2) Fused attention + out-projection (need_weights=True), grid (B, L//tq).
#    Head-averaged weights computed in-kernel with EXACT normalization;
#    out-projection accumulated per head (no concatenate).
# ---------------------------------------------------------------------------

def _attn_kernel(q_ref, k_ref, v_ref, wo_ref, bo_ref, o_ref, w_ref, *,
                 num_heads, head_dim, q_off, k_off, v_off):
    w_acc = None
    out_acc = None
    for h in range(num_heads):                     # static unrolled head loop
        lo = h * head_dim
        q = q_ref[0, :, q_off + lo:q_off + lo + head_dim]      # (tq, hd) bf16
        k = k_ref[0, :, k_off + lo:k_off + lo + head_dim]      # (S,  hd) bf16
        v = v_ref[0, :, v_off + lo:v_off + lo + head_dim]      # (S,  hd) bf16

        s = lax.dot_general(q, k, (((1,), (1,)), ((), ())),
                            preferred_element_type=jnp.float32)  # (tq, S)
        m = jnp.max(s, axis=-1, keepdims=True)
        e = jnp.exp(s - m)
        inv = 1.0 / jnp.sum(e, axis=-1, keepdims=True)   # exact (user-visible)
        p = e * inv                                       # (tq, S) f32

        w_acc = p if w_acc is None else w_acc + p
        o_h = jnp.dot(p.astype(jnp.bfloat16), v,
                      preferred_element_type=jnp.float32)         # (tq, hd)
        # Fused per-head out-projection (wo pre-transposed: sublane slice).
        contrib = lax.dot_general(o_h.astype(jnp.bfloat16),
                                  wo_ref[lo:lo + head_dim, :],
                                  (((1,), (0,)), ((), ())),
                                  preferred_element_type=jnp.float32)  # (tq, E)
        out_acc = contrib if out_acc is None else out_acc + contrib

    w_ref[0] = w_acc * (1.0 / num_heads)
    o_ref[0] = (out_acc + bo_ref[...]).astype(o_ref.dtype)


def attention_pallas(qkv, wo_t, out_b, num_heads, *, tq=256):
    """qkv: (B, L, 3E) bf16 -> (out (B, L, E) f32, avg weights (B, L, L) f32)."""
    B, L, threeE = qkv.shape
    E = threeE // 3
    hd = E // num_heads
    tq = _tile(L, tq)

    qkv_specs, q_off, k_off, v_off = _qkv_specs(
        L, threeE, tq, L,
        q_map=lambda b, qi: (b, qi, 0),
        k_map=lambda b, qi: (b, 0, 1),
        v_map=lambda b, qi: (b, 0, 2),
        full_map=lambda b, qi: (b, qi, 0))

    kern = functools.partial(_attn_kernel, num_heads=num_heads, head_dim=hd,
                             q_off=q_off, k_off=k_off, v_off=v_off)
    return pl.pallas_call(
        kern,
        out_shape=(jax.ShapeDtypeStruct((B, L, E), jnp.float32),
                   jax.ShapeDtypeStruct((B, L, L), jnp.float32)),
        grid=(B, L // tq),
        in_specs=qkv_specs + [
            pl.BlockSpec((E, E), lambda b, qi: (0, 0)),
            pl.BlockSpec((1, E), lambda b, qi: (0, 0)),
        ],
        out_specs=(pl.BlockSpec((1, tq, E), lambda b, qi: (b, qi, 0)),
                   pl.BlockSpec((1, tq, L), lambda b, qi: (b, qi, 0))),
        compiler_params=pltpu.CompilerParams(
            dimension_semantics=("parallel", "parallel"),
            vmem_limit_bytes=_VMEM_LIMIT),
    )(qkv, qkv, qkv, wo_t, out_b.reshape(1, E))


# ---------------------------------------------------------------------------
# 3) need_weights=False: flash-style online softmax, grid (B, L//tq, L//ts)
#    with KV tiles last ("arbitrary"); per-head q cached in VMEM at si==0;
#    out-projection accumulated per head and fused into the final store.
# ---------------------------------------------------------------------------

def _flash_kernel(q_ref, k_ref, v_ref, wo_ref, bo_ref, o_ref,
                  q_sc, m_sc, l_sc, acc_sc, *,
                  num_heads, head_dim, q_off, k_off, v_off):
    si = pl.program_id(2)

    @pl.when(si == 0)
    def _():
        m_sc[...] = jnp.full(m_sc.shape, -jnp.inf, m_sc.dtype)
        l_sc[...] = jnp.zeros(l_sc.shape, l_sc.dtype)
        acc_sc[...] = jnp.zeros(acc_sc.shape, acc_sc.dtype)
        for h in range(num_heads):      # hoist per-head q slices out of KV loop
            lo = h * head_dim
            q_sc[h] = q_ref[0, :, q_off + lo:q_off + lo + head_dim]

    for h in range(num_heads):
        lo = h * head_dim
        k = k_ref[0, :, k_off + lo:k_off + lo + head_dim]       # (ts, hd) bf16
        v = v_ref[0, :, v_off + lo:v_off + lo + head_dim]       # (ts, hd) bf16
        s = lax.dot_general(q_sc[h], k, (((1,), (1,)), ((), ())),
                            preferred_element_type=jnp.float32)  # (tq, ts)
        m_prev = m_sc[h]
        m_new = jnp.maximum(m_prev, jnp.max(s, axis=-1, keepdims=True))
        alpha = jnp.exp(m_prev - m_new)
        p = jnp.exp(s - m_new)
        l_sc[h] = alpha * l_sc[h] + jnp.sum(p, axis=-1, keepdims=True)
        acc_sc[h] = alpha * acc_sc[h] + jnp.dot(p.astype(jnp.bfloat16), v,
                                                preferred_element_type=jnp.float32)
        m_sc[h] = m_new

    @pl.when(si == pl.num_programs(2) - 1)
    def _():
        out_acc = None
        for h in range(num_heads):
            lo = h * head_dim
            o_h = acc_sc[h] * pl.reciprocal(l_sc[h], approx=True)
            contrib = lax.dot_general(o_h.astype(jnp.bfloat16),
                                      wo_ref[lo:lo + head_dim, :],
                                      (((1,), (0,)), ((), ())),
                                      preferred_element_type=jnp.float32)
            out_acc = contrib if out_acc is None else out_acc + contrib
        o_ref[0] = (out_acc + bo_ref[...]).astype(o_ref.dtype)


def attention_flash_pallas(qkv, wo_t, out_b, num_heads, *, tq=256, kv_tile=512):
    B, L, threeE = qkv.shape
    E = threeE // 3
    hd = E // num_heads
    tq = _tile(L, tq)
    ts = _tile(L, kv_tile)

    qkv_specs, q_off, k_off, v_off = _qkv_specs(
        L, threeE, tq, ts,
        q_map=lambda b, qi, si: (b, qi, 0),
        k_map=lambda b, qi, si: (b, si, 1),
        v_map=lambda b, qi, si: (b, si, 2),
        full_map=lambda b, qi, si: (b, qi, 0))

    kern = functools.partial(_flash_kernel, num_heads=num_heads, head_dim=hd,
                             q_off=q_off, k_off=k_off, v_off=v_off)
    return pl.pallas_call(
        kern,
        out_shape=jax.ShapeDtypeStruct((B, L, E), jnp.float32),
        grid=(B, L // tq, L // ts),
        in_specs=qkv_specs + [
            pl.BlockSpec((E, E), lambda b, qi, si: (0, 0)),
            pl.BlockSpec((1, E), lambda b, qi, si: (0, 0)),
        ],
        out_specs=pl.BlockSpec((1, tq, E), lambda b, qi, si: (b, qi, 0)),
        scratch_shapes=[
            pltpu.VMEM((num_heads, tq, hd), jnp.bfloat16),  # cached scaled q
            pltpu.VMEM((num_heads, tq, 1), jnp.float32),    # running max
            pltpu.VMEM((num_heads, tq, 1), jnp.float32),    # running denom
            pltpu.VMEM((num_heads, tq, hd), jnp.float32),   # running numerator
        ],
        compiler_params=pltpu.CompilerParams(
            dimension_semantics=("parallel", "parallel", "arbitrary"),
            vmem_limit_bytes=_VMEM_LIMIT),
    )(qkv, qkv, qkv, wo_t, out_b.reshape(1, E))


# ---------------------------------------------------------------------------
# Full MultiheadAttention forward (self-attention fast path)
# ---------------------------------------------------------------------------

@functools.partial(jax.jit, static_argnames=("num_heads", "need_weights"))
def multihead_attention_forward(x, in_proj_w, in_proj_b, out_w, out_b, *,
                                num_heads, need_weights=True):
    L, B, E = x.shape
    hd = E // num_heads
    scaling = float(hd) ** (-0.5)

    # Fold q scaling into the in-projection (q rows of W and b): equivalent to
    # (x @ Wq.T + bq) * scaling, so the kernels never rescale q per step.
    row_scale = jnp.concatenate([jnp.full((E,), scaling, jnp.float32),
                                 jnp.ones((2 * E,), jnp.float32)])
    w_in = (in_proj_w * row_scale[:, None]).astype(jnp.bfloat16)
    b_in = in_proj_b * row_scale                      # bias stays f32 (tiny)
    wo_t = out_w.T.astype(jnp.bfloat16)               # (E_in, E_out): head slices on sublanes
    x_bf = x.astype(jnp.bfloat16)

    # Single boundary transpose to batch-first; everything downstream is fused.
    xb = jnp.transpose(x_bf, (1, 0, 2)).reshape(B * L, E)     # (B*L, E) bf16
    qkv = linear_pallas(xb, w_in, b_in).reshape(B, L, 3 * E)  # (B, L, 3E) bf16

    if need_weights:
        out_bl, attn_w_avg = attention_pallas(qkv, wo_t, out_b, num_heads)
    else:
        out_bl = attention_flash_pallas(qkv, wo_t, out_b, num_heads)
        attn_w_avg = None

    out = jnp.transpose(out_bl, (1, 0, 2))                    # back to (L, B, E)
    return out, attn_w_avg


# ---------------------------------------------------------------------------
# Pure-JAX reference (f32, same math, no Pallas) for sanity checking
# ---------------------------------------------------------------------------

def _reference(x, in_proj_w, in_proj_b, out_w, out_b, num_heads):
    L, B, E = x.shape
    H = num_heads
    hd = E // H
    scaling = float(hd) ** (-0.5)
    qkv = x.reshape(L * B, E) @ in_proj_w.T + in_proj_b
    q, k, v = jnp.split(qkv, 3, axis=-1)
    q = q * scaling
    to_heads = lambda t: t.reshape(L, B * H, hd).transpose(1, 0, 2)
    qh, kh, vh = to_heads(q), to_heads(k), to_heads(v)
    s = jnp.einsum("bld,bsd->bls", qh, kh)
    p = jax.nn.softmax(s, axis=-1)
    o = jnp.einsum("bls,bsd->bld", p, vh)
    o = o.transpose(1, 0, 2).reshape(L * B, E) @ out_w.T + out_b
    return o.reshape(L, B, E), p.reshape(B, H, L, L).mean(axis=1)


# ---------------------------------------------------------------------------
# Main
# ---------------------------------------------------------------------------

if __name__ == "__main__":
    # seq=16, batch=2, embed_dim=128, 4 heads (E multiple of 128 -> lane-dense
    # plane-split qkv specs; a non-multiple E falls back to full-3E blocks).
    L, B, E, H = 16, 2, 128, 4

    key = jax.random.PRNGKey(0)
    k_x, k_w_in, k_w_out = jax.random.split(key, 3)

    # Deterministic parameter init (mirrors MultiheadAttention._reset_parameters):
    xav_bound = (6.0 / (3 * E + E)) ** 0.5
    in_proj_w = jax.random.uniform(k_w_in, (3 * E, E), jnp.float32,
                                   minval=-xav_bound, maxval=xav_bound)
    in_proj_b = jnp.zeros((3 * E,), jnp.float32)
    lin_bound = 1.0 / (E ** 0.5)
    out_w = jax.random.uniform(k_w_out, (E, E), jnp.float32,
                               minval=-lin_bound, maxval=lin_bound)
    out_b = jnp.zeros((E,), jnp.float32)

    # query == key == value (the common self-attention fast path of the module)
    x = jax.random.normal(k_x, (L, B, E), jnp.float32)

    out, attn_w = multihead_attention_forward(
        x, in_proj_w, in_proj_b, out_w, out_b, num_heads=H, need_weights=True)
    out = jax.block_until_ready(out)
    attn_w = jax.block_until_ready(attn_w)

    out_nw, _ = multihead_attention_forward(
        x, in_proj_w, in_proj_b, out_w, out_b, num_heads=H, need_weights=False)
    out_nw = jax.block_until_ready(out_nw)

    ref_out, ref_w = _reference(x, in_proj_w, in_proj_b, out_w, out_b, H)

    assert out.shape == (L, B, E) and attn_w.shape == (B, L, L)
    # bf16 streaming + bf16 MXU operands => looser tolerances than f32
    assert jnp.allclose(out, ref_out, atol=3e-2, rtol=3e-2), "output mismatch"
    assert jnp.allclose(attn_w, ref_w, atol=2e-2, rtol=2e-2), "weights mismatch"
    assert jnp.allclose(out_nw, ref_out, atol=3e-2, rtol=3e-2), "flash output mismatch"

    # TODO(synk): key_padding_mask / attn_mask / bias_kv / add_zero_attn / dropout /
    # use_separate_proj_weight / static_k / static_v branches of
    # multi_head_attention_forward are not implemented (module defaults used).

    print("KERNEL_OK")
</pallas_src>

<mosaic_0001>
module attributes {stable_mosaic.version = 11 : i64} {
  func.func @_linear_kernel(%arg0: i32, %arg1: i32, %arg2: i32, %arg3: memref<32x128xbf16, #tpu.memory_space<vmem>>, %arg4: memref<384x128xbf16, #tpu.memory_space<vmem>>, %arg5: memref<1x384xf32, #tpu.memory_space<vmem>>, %arg6: memref<32x384xbf16, #tpu.memory_space<vmem>>, %arg7: memref<32x384xf32, #tpu.memory_space<vmem>>) attributes {dimension_semantics = [#tpu.dimension_semantics<parallel>, #tpu.dimension_semantics<parallel>, #tpu.dimension_semantics<arbitrary>], iteration_bounds = array<i64: 1, 1, 1>, scalar_prefetch = 0 : i64, scratch_operands = 1 : i64, tpu.core_type = #tpu.core_type<tc>, window_params = [{transform_indices = @transform_0, window_bounds = array<i64: 32, 128>}, {transform_indices = @transform_1, window_bounds = array<i64: 384, 128>}, {transform_indices = @transform_2, window_bounds = array<i64: 1, 384>}, {transform_indices = @transform_3, window_bounds = array<i64: 32, 384>}]} {
    %c0_i32 = arith.constant 0 : i32
    %0 = arith.cmpi eq, %arg2, %c0_i32 : i32
    %1 = arith.extui %0 : i1 to i32
    %c0_i32_0 = arith.constant 0 : i32
    %2 = arith.cmpi ne, %1, %c0_i32_0 : i32
    scf.if %2 {
      %cst_10 = arith.constant 0.000000e+00 : f32
      %12 = vector.broadcast %cst_10 : f32 to vector<32x384xf32>
      %c0_11 = arith.constant 0 : index
      %c0_12 = arith.constant 0 : index
      %13 = vector.load %arg7[%c0_11, %c0_12] : memref<32x384xf32, #tpu.memory_space<vmem>>, vector<32x384xf32>
      tpu.vector_store %arg7[%c0_11, %c0_12], %12 {strides = array<i32>} : memref<32x384xf32, #tpu.memory_space<vmem>>, vector<32x384xf32>,
    } else {
    }
    %c0 = arith.constant 0 : index
    %c0_1 = arith.constant 0 : index
    %3 = vector.load %arg7[%c0, %c0_1] : memref<32x384xf32, #tpu.memory_space<vmem>>, vector<32x384xf32>
    %c0_2 = arith.constant 0 : index
    %c0_3 = arith.constant 0 : index
    %4 = vector.load %arg3[%c0_2, %c0_3] : memref<32x128xbf16, #tpu.memory_space<vmem>>, vector<32x128xbf16>
    %c0_4 = arith.constant 0 : index
    %c0_5 = arith.constant 0 : index
    %5 = vector.load %arg4[%c0_4, %c0_5] : memref<384x128xbf16, #tpu.memory_space<vmem>>, vector<384x128xbf16>
    %cst = arith.constant dense<0.000000e+00> : vector<32x384xf32>
    %6 = tpu.matmul %4, %5, %cst {dimension_numbers = #tpu.dot_dimension_numbers<[1], [1], [0], [0], [0, 0, 1, 0], [], []>} : vector<32x128xbf16>, vector<384x128xbf16>, vector<32x384xf32> -> vector<32x384xf32>
    %7 = arith.addf %3, %6 : vector<32x384xf32>
    %c0_6 = arith.constant 0 : index
    %c0_7 = arith.constant 0 : index
    %8 = vector.load %arg7[%c0_6, %c0_7] : memref<32x384xf32, #tpu.memory_space<vmem>>, vector<32x384xf32>
    tpu.vector_store %arg7[%c0_6, %c0_7], %7 {strides = array<i32>} : memref<32x384xf32, #tpu.memory_space<vmem>>, vector<32x384xf32>,
    %c0_i32_8 = arith.constant 0 : i32
    %9 = arith.cmpi eq, %arg2, %c0_i32_8 : i32
    %10 = arith.extui %9 : i1 to i32
    %c0_i32_9 = arith.constant 0 : i32
    %11 = arith.cmpi ne, %10, %c0_i32_9 : i32
    scf.if %11 {
      %c0_10 = arith.constant 0 : index
      %c0_11 = arith.constant 0 : index
      %12 = vector.load %arg7[%c0_10, %c0_11] : memref<32x384xf32, #tpu.memory_space<vmem>>, vector<32x384xf32>
      %c0_12 = arith.constant 0 : index
      %c0_13 = arith.constant 0 : index
      %13 = vector.load %arg5[%c0_12, %c0_13] : memref<1x384xf32, #tpu.memory_space<vmem>>, vector<1x384xf32>
      %14 = vector.broadcast %13 : vector<1x384xf32> to vector<32x384xf32>
      %15 = arith.addf %12, %14 : vector<32x384xf32>
      %16 = arith.truncf %15 : vector<32x384xf32> to vector<32x384xbf16>
      %c0_14 = arith.constant 0 : index
      %c0_15 = arith.constant 0 : index
      %17 = vector.load %arg6[%c0_14, %c0_15] : memref<32x384xbf16, #tpu.memory_space<vmem>>, vector<32x384xbf16>
      tpu.vector_store %arg6[%c0_14, %c0_15], %16 {strides = array<i32>} : memref<32x384xbf16, #tpu.memory_space<vmem>>, vector<32x384xbf16>,
    } else {
    }
    return
  }
  func.func @transform_0(%arg0: i32, %arg1: i32, %arg2: i32) -> (i32, i32) {
    %c0_i32 = arith.constant 0 : i32
    return %arg0, %arg2 : i32, i32
  }
  func.func @transform_1(%arg0: i32, %arg1: i32, %arg2: i32) -> (i32, i32) {
    %c0_i32 = arith.constant 0 : i32
    return %arg1, %arg2 : i32, i32
  }
  func.func @transform_2(%arg0: i32, %arg1: i32, %arg2: i32) -> (i32, i32) {
    %c0_i32 = arith.constant 0 : i32
    %c0_i32_0 = arith.constant 0 : i32
    return %c0_i32, %arg1 : i32, i32
  }
  func.func @transform_3(%arg0: i32, %arg1: i32, %arg2: i32) -> (i32, i32) {
    %c0_i32 = arith.constant 0 : i32
    return %arg0, %arg1 : i32, i32
  }
}

module attributes {stable_mosaic.version = 11 : i64} {
  func.func @_attn_kernel(%arg0: i32, %arg1: i32, %arg2: memref<1x16x128xbf16, #tpu.memory_space<vmem>>, %arg3: memref<1x16x128xbf16, #tpu.memory_space<vmem>>, %arg4: memref<1x16x128xbf16, #tpu.memory_space<vmem>>, %arg5: memref<128x128xbf16, #tpu.memory_space<vmem>>, %arg6: memref<1x128xf32, #tpu.memory_space<vmem>>, %arg7: memref<1x16x128xf32, #tpu.memory_space<vmem>>, %arg8: memref<1x16x16xf32, #tpu.memory_space<vmem>>) attributes {dimension_semantics = [#tpu.dimension_semantics<parallel>, #tpu.dimension_semantics<parallel>], iteration_bounds = array<i64: 2, 1>, scalar_prefetch = 0 : i64, scratch_operands = 0 : i64, tpu.core_type = #tpu.core_type<tc>, window_params = [{transform_indices = @transform_0, window_bounds = array<i64: 1, 16, 128>}, {transform_indices = @transform_1, window_bounds = array<i64: 1, 16, 128>}, {transform_indices = @transform_2, window_bounds = array<i64: 1, 16, 128>}, {pipeline_mode = #tpu.pipeline_mode<synchronous>, transform_indices = @transform_3, window_bounds = array<i64: 128, 128>}, {pipeline_mode = #tpu.pipeline_mode<synchronous>, transform_indices = @transform_4, window_bounds = array<i64: 1, 128>}, {transform_indices = @transform_5, window_bounds = array<i64: 1, 16, 128>}, {transform_indices = @transform_6, window_bounds = array<i64: 1, 16, 16>}]} {
    %c0 = arith.constant 0 : index
    %c0_0 = arith.constant 0 : index
    %c0_1 = arith.constant 0 : index
    %0 = vector.load %arg2[%c0, %c0_0, %c0_1] : memref<1x16x128xbf16, #tpu.memory_space<vmem>>, vector<1x16x32xbf16>
    %1 = vector.shape_cast %0 : vector<1x16x32xbf16> to vector<16x32xbf16>
    %c0_2 = arith.constant 0 : index
    %c0_3 = arith.constant 0 : index
    %c0_4 = arith.constant 0 : index
    %2 = vector.load %arg3[%c0_2, %c0_3, %c0_4] : memref<1x16x128xbf16, #tpu.memory_space<vmem>>, vector<1x16x32xbf16>
    %3 = vector.shape_cast %2 : vector<1x16x32xbf16> to vector<16x32xbf16>
    %c0_5 = arith.constant 0 : index
    %c0_6 = arith.constant 0 : index
    %c0_7 = arith.constant 0 : index
    %4 = vector.load %arg4[%c0_5, %c0_6, %c0_7] : memref<1x16x128xbf16, #tpu.memory_space<vmem>>, vector<1x16x32xbf16>
    %5 = vector.shape_cast %4 : vector<1x16x32xbf16> to vector<16x32xbf16>
    %cst = arith.constant dense<0.000000e+00> : vector<16x16xf32>
    %6 = tpu.matmul %1, %3, %cst {dimension_numbers = #tpu.dot_dimension_numbers<[1], [1], [0], [0], [0, 0, 1, 0], [], []>} : vector<16x32xbf16>, vector<16x32xbf16>, vector<16x16xf32> -> vector<16x16xf32>
    %cst_8 = arith.constant dense<0xFF800000> : vector<16xf32>
    %7 = vector.multi_reduction <maximumf>, %6, %cst_8 [1] : vector<16x16xf32> to vector<16xf32>
    %8 = vector.shape_cast %7 : vector<16xf32> to vector<16x1xf32>
    %9 = vector.broadcast %8 : vector<16x1xf32> to vector<16x16xf32>
    %10 = arith.subf %6, %9 : vector<16x16xf32>
    %11 = math.exp %10 : vector<16x16xf32>
    %cst_9 = arith.constant dense<0.000000e+00> : vector<16xf32>
    %12 = vector.multi_reduction <add>, %11, %cst_9 [1] : vector<16x16xf32> to vector<16xf32>
    %13 = vector.shape_cast %12 : vector<16xf32> to vector<16x1xf32>
    %cst_10 = arith.constant 1.000000e+00 : f32
    %14 = vector.broadcast %cst_10 : f32 to vector<16x1xf32>
    %15 = arith.divf %14, %13 : vector<16x1xf32>
    %16 = vector.broadcast %15 : vector<16x1xf32> to vector<16x16xf32>
    %17 = arith.mulf %11, %16 : vector<16x16xf32>
    %18 = arith.truncf %17 : vector<16x16xf32> to vector<16x16xbf16>
    %cst_11 = arith.constant dense<0.000000e+00> : vector<16x32xf32>
    %19 = tpu.matmul %18, %5, %cst_11 {dimension_numbers = #tpu.dot_dimension_numbers<[1], [0], [0], [1], [0, 0, 1, 1], [], []>} : vector<16x16xbf16>, vector<16x32xbf16>, vector<16x32xf32> -> vector<16x32xf32>
    %20 = arith.truncf %19 : vector<16x32xf32> to vector<16x32xbf16>
    %c0_12 = arith.constant 0 : index
    %c0_13 = arith.constant 0 : index
    %21 = vector.load %arg5[%c0_12, %c0_13] : memref<128x128xbf16, #tpu.memory_space<vmem>>, vector<32x128xbf16>
    %cst_14 = arith.constant dense<0.000000e+00> : vector<16x128xf32>
    %22 = tpu.matmul %20, %21, %cst_14 {dimension_numbers = #tpu.dot_dimension_numbers<[1], [0], [0], [1], [0, 0, 1, 1], [], []>} : vector<16x32xbf16>, vector<32x128xbf16>, vector<16x128xf32> -> vector<16x128xf32>
    %c0_15 = arith.constant 0 : index
    %c0_16 = arith.constant 0 : index
    %c32 = arith.constant 32 : index
    %23 = vector.load %arg2[%c0_15, %c0_16, %c32] : memref<1x16x128xbf16, #tpu.memory_space<vmem>>, vector<1x16x32xbf16>
    %24 = vector.shape_cast %23 : vector<1x16x32xbf16> to vector<16x32xbf16>
    %c0_17 = arith.constant 0 : index
    %c0_18 = arith.constant 0 : index
    %c32_19 = arith.constant 32 : index
    %25 = vector.load %arg3[%c0_17, %c0_18, %c32_19] : memref<1x16x128xbf16, #tpu.memory_space<vmem>>, vector<1x16x32xbf16>
    %26 = vector.shape_cast %25 : vector<1x16x32xbf16> to vector<16x32xbf16>
    %c0_20 = arith.constant 0 : index
    %c0_21 = arith.constant 0 : index
    %c32_22 = arith.constant 32 : index
    %27 = vector.load %arg4[%c0_20, %c0_21, %c32_22] : memref<1x16x128xbf16, #tpu.memory_space<vmem>>, vector<1x16x32xbf16>
    %28 = vector.shape_cast %27 : vector<1x16x32xbf16> to vector<16x32xbf16>
    %cst_23 = arith.constant dense<0.000000e+00> : vector<16x16xf32>
    %29 = tpu.matmul %24, %26, %cst_23 {dimension_numbers = #tpu.dot_dimension_numbers<[1], [1], [0], [0], [0, 0, 1, 0], [], []>} : vector<16x32xbf16>, vector<16x32xbf16>, vector<16x16xf32> -> vector<16x16xf32>
    %cst_24 = arith.constant dense<0xFF800000> : vector<16xf32>
    %30 = vector.multi_reduction <maximumf>, %29, %cst_24 [1] : vector<16x16xf32> to vector<16xf32>
    %31 = vector.shape_cast %30 : vector<16xf32> to vector<16x1xf32>
    %32 = vector.broadcast %31 : vector<16x1xf32> to vector<16x16xf32>
    %33 = arith.subf %29, %32 : vector<16x16xf32>
    %34 = math.exp %33 : vector<16x16xf32>
    %cst_25 = arith.constant dense<0.000000e+00> : vector<16xf32>
    %35 = vector.multi_reduction <add>, %34, %cst_25 [1] : vector<16x16xf32> to vector<16xf32>
    %36 = vector.shape_cast %35 : vector<16xf32> to vector<16x1xf32>
    %cst_26 = arith.constant 1.000000e+00 : f32
    %37 = vector.broadcast %cst_26 : f32 to vector<16x1xf32>
    %38 = arith.divf %37, %36 : vector<16x1xf32>
    %39 = vector.broadcast %38 : vector<16x1xf32> to vector<16x16xf32>
    %40 = arith.mulf %34, %39 : vector<16x16xf32>
    %41 = arith.addf %17, %40 : vector<16x16xf32>
    %42 = arith.truncf %40 : vector<16x16xf32> to vector<16x16xbf16>
    %cst_27 = arith.constant dense<0.000000e+00> : vector<16x32xf32>
    %43 = tpu.matmul %42, %28, %cst_27 {dimension_numbers = #tpu.dot_dimension_numbers<[1], [0], [0], [1], [0, 0, 1, 1], [], []>} : vector<16x16xbf16>, vector<16x32xbf16>, vector<16x32xf32> -> vector<16x32xf32>
    %44 = arith.truncf %43 : vector<16x32xf32> to vector<16x32xbf16>
    %c32_28 = arith.constant 32 : index
    %c0_29 = arith.constant 0 : index
    %45 = vector.load %arg5[%c32_28, %c0_29] : memref<128x128xbf16, #tpu.memory_space<vmem>>, vector<32x128xbf16>
    %cst_30 = arith.constant dense<0.000000e+00> : vector<16x128xf32>
    %46 = tpu.matmul %44, %45, %cst_30 {dimension_numbers = #tpu.dot_dimension_numbers<[1], [0], [0], [1], [0, 0, 1, 1], [], []>} : vector<16x32xbf16>, vector<32x128xbf16>, vector<16x128xf32> -> vector<16x128xf32>
    %47 = arith.addf %22, %46 : vector<16x128xf32>
    %c0_31 = arith.constant 0 : index
    %c0_32 = arith.constant 0 : index
    %c64 = arith.constant 64 : index
    %48 = vector.load %arg2[%c0_31, %c0_32, %c64] : memref<1x16x128xbf16, #tpu.memory_space<vmem>>, vector<1x16x32xbf16>
    %49 = vector.shape_cast %48 : vector<1x16x32xbf16> to vector<16x32xbf16>
    %c0_33 = arith.constant 0 : index
    %c0_34 = arith.constant 0 : index
    %c64_35 = arith.constant 64 : index
    %50 = vector.load %arg3[%c0_33, %c0_34, %c64_35] : memref<1x16x128xbf16, #tpu.memory_space<vmem>>, vector<1x16x32xbf16>
    %51 = vector.shape_cast %50 : vector<1x16x32xbf16> to vector<16x32xbf16>
    %c0_36 = arith.constant 0 : index
    %c0_37 = arith.constant 0 : index
    %c64_38 = arith.constant 64 : index
    %52 = vector.load %arg4[%c0_36, %c0_37, %c64_38] : memref<1x16x128xbf16, #tpu.memory_space<vmem>>, vector<1x16x32xbf16>
    %53 = vector.shape_cast %52 : vector<1x16x32xbf16> to vector<16x32xbf16>
    %cst_39 = arith.constant dense<0.000000e+00> : vector<16x16xf32>
    %54 = tpu.matmul %49, %51, %cst_39 {dimension_numbers = #tpu.dot_dimension_numbers<[1], [1], [0], [0], [0, 0, 1, 0], [], []>} : vector<16x32xbf16>, vector<16x32xbf16>, vector<16x16xf32> -> vector<16x16xf32>
    %cst_40 = arith.constant dense<0xFF800000> : vector<16xf32>
    %55 = vector.multi_reduction <maximumf>, %54, %cst_40 [1] : vector<16x16xf32> to vector<16xf32>
    %56 = vector.shape_cast %55 : vector<16xf32> to vector<16x1xf32>
    %57 = vector.broadcast %56 : vector<16x1xf32> to vector<16x16xf32>
    %58 = arith.subf %54, %57 : vector<16x16xf32>
    %59 = math.exp %58 : vector<16x16xf32>
    %cst_41 = arith.constant dense<0.000000e+00> : vector<16xf32>
    %60 = vector.multi_reduction <add>, %59, %cst_41 [1] : vector<16x16xf32> to vector<16xf32>
    %61 = vector.shape_cast %60 : vector<16xf32> to vector<16x1xf32>
    %cst_42 = arith.constant 1.000000e+00 : f32
    %62 = vector.broadcast %cst_42 : f32 to vector<16x1xf32>
    %63 = arith.divf %62, %61 : vector<16x1xf32>
    %64 = vector.broadcast %63 : vector<16x1xf32> to vector<16x16xf32>
    %65 = arith.mulf %59, %64 : vector<16x16xf32>
    %66 = arith.addf %41, %65 : vector<16x16xf32>
    %67 = arith.truncf %65 : vector<16x16xf32> to vector<16x16xbf16>
    %cst_43 = arith.constant dense<0.000000e+00> : vector<16x32xf32>
    %68 = tpu.matmul %67, %53, %cst_43 {dimension_numbers = #tpu.dot_dimension_numbers<[1], [0], [0], [1], [0, 0, 1, 1], [], []>} : vector<16x16xbf16>, vector<16x32xbf16>, vector<16x32xf32> -> vector<16x32xf32>
    %69 = arith.truncf %68 : vector<16x32xf32> to vector<16x32xbf16>
    %c64_44 = arith.constant 64 : index
    %c0_45 = arith.constant 0 : index
    %70 = vector.load %arg5[%c64_44, %c0_45] : memref<128x128xbf16, #tpu.memory_space<vmem>>, vector<32x128xbf16>
    %cst_46 = arith.constant dense<0.000000e+00> : vector<16x128xf32>
    %71 = tpu.matmul %69, %70, %cst_46 {dimension_numbers = #tpu.dot_dimension_numbers<[1], [0], [0], [1], [0, 0, 1, 1], [], []>} : vector<16x32xbf16>, vector<32x128xbf16>, vector<16x128xf32> -> vector<16x128xf32>
    %72 = arith.addf %47, %71 : vector<16x128xf32>
    %c0_47 = arith.constant 0 : index
    %c0_48 = arith.constant 0 : index
    %c96 = arith.constant 96 : index
    %73 = vector.load %arg2[%c0_47, %c0_48, %c96] : memref<1x16x128xbf16, #tpu.memory_space<vmem>>, vector<1x16x32xbf16>
    %74 = vector.shape_cast %73 : vector<1x16x32xbf16> to vector<16x32xbf16>
    %c0_49 = arith.constant 0 : index
    %c0_50 = arith.constant 0 : index
    %c96_51 = arith.constant 96 : index
    %75 = vector.load %arg3[%c0_49, %c0_50, %c96_51] : memref<1x16x128xbf16, #tpu.memory_space<vmem>>, vector<1x16x32xbf16>
    %76 = vector.shape_cast %75 : vector<1x16x32xbf16> to vector<16x32xbf16>
    %c0_52 = arith.constant 0 : index
    %c0_53 = arith.constant 0 : index
    %c96_54 = arith.constant 96 : index
    %77 = vector.load %arg4[%c0_52, %c0_53, %c96_54] : memref<1x16x128xbf16, #tpu.memory_space<vmem>>, vector<1x16x32xbf16>
    %78 = vector.shape_cast %77 : vector<1x16x32xbf16> to vector<16x32xbf16>
    %cst_55 = arith.constant dense<0.000000e+00> : vector<16x16xf32>
    %79 = tpu.matmul %74, %76, %cst_55 {dimension_numbers = #tpu.dot_dimension_numbers<[1], [1], [0], [0], [0, 0, 1, 0], [], []>} : vector<16x32xbf16>, vector<16x32xbf16>, vector<16x16xf32> -> vector<16x16xf32>
    %cst_56 = arith.constant dense<0xFF800000> : vector<16xf32>
    %80 = vector.multi_reduction <maximumf>, %79, %cst_56 [1] : vector<16x16xf32> to vector<16xf32>
    %81 = vector.shape_cast %80 : vector<16xf32> to vector<16x1xf32>
    %82 = vector.broadcast %81 : vector<16x1xf32> to vector<16x16xf32>
    %83 = arith.subf %79, %82 : vector<16x16xf32>
    %84 = math.exp %83 : vector<16x16xf32>
    %cst_57 = arith.constant dense<0.000000e+00> : vector<16xf32>
    %85 = vector.multi_reduction <add>, %84, %cst_57 [1] : vector<16x16xf32> to vector<16xf32>
    %86 = vector.shape_cast %85 : vector<16xf32> to vector<16x1xf32>
    %cst_58 = arith.constant 1.000000e+00 : f32
    %87 = vector.broadcast %cst_58 : f32 to vector<16x1xf32>
    %88 = arith.divf %87, %86 : vector<16x1xf32>
    %89 = vector.broadcast %88 : vector<16x1xf32> to vector<16x16xf32>
    %90 = arith.mulf %84, %89 : vector<16x16xf32>
    %91 = arith.addf %66, %90 : vector<16x16xf32>
    %92 = arith.truncf %90 : vector<16x16xf32> to vector<16x16xbf16>
    %cst_59 = arith.constant dense<0.000000e+00> : vector<16x32xf32>
    %93 = tpu.matmul %92, %78, %cst_59 {dimension_numbers = #tpu.dot_dimension_numbers<[1], [0], [0], [1], [0, 0, 1, 1], [], []>} : vector<16x16xbf16>, vector<16x32xbf16>, vector<16x32xf32> -> vector<16x32xf32>
    %94 = arith.truncf %93 : vector<16x32xf32> to vector<16x32xbf16>
    %c96_60 = arith.constant 96 : index
    %c0_61 = arith.constant 0 : index
    %95 = vector.load %arg5[%c96_60, %c0_61] : memref<128x128xbf16, #tpu.memory_space<vmem>>, vector<32x128xbf16>
    %cst_62 = arith.constant dense<0.000000e+00> : vector<16x128xf32>
    %96 = tpu.matmul %94, %95, %cst_62 {dimension_numbers = #tpu.dot_dimension_numbers<[1], [0], [0], [1], [0, 0, 1, 1], [], []>} : vector<16x32xbf16>, vector<32x128xbf16>, vector<16x128xf32> -> vector<16x128xf32>
    %97 = arith.addf %72, %96 : vector<16x128xf32>
    %cst_63 = arith.constant 2.500000e-01 : f32
    %98 = vector.broadcast %cst_63 : f32 to vector<16x16xf32>
    %99 = arith.mulf %91, %98 : vector<16x16xf32>
    %c0_64 = arith.constant 0 : index
    %c0_65 = arith.constant 0 : index
    %c0_66 = arith.constant 0 : index
    %100 = vector.load %arg8[%c0_64, %c0_65, %c0_66] : memref<1x16x16xf32, #tpu.memory_space<vmem>>, vector<1x16x16xf32>
    %101 = vector.shape_cast %100 : vector<1x16x16xf32> to vector<16x16xf32>
    %102 = vector.shape_cast %99 : vector<16x16xf32> to vector<1x16x16xf32>
    tpu.vector_store %arg8[%c0_64, %c0_65, %c0_66], %102 {strides = array<i32>} : memref<1x16x16xf32, #tpu.memory_space<vmem>>, vector<1x16x16xf32>,
    %c0_67 = arith.constant 0 : index
    %c0_68 = arith.constant 0 : index
    %103 = vector.load %arg6[%c0_67, %c0_68] : memref<1x128xf32, #tpu.memory_space<vmem>>, vector<1x128xf32>
    %104 = vector.broadcast %103 : vector<1x128xf32> to vector<16x128xf32>
    %105 = arith.addf %97, %104 : vector<16x128xf32>
    %c0_69 = arith.constant 0 : index
    %c0_70 = arith.constant 0 : index
    %c0_71 = arith.constant 0 : index
    %106 = vector.load %arg7[%c0_69, %c0_70, %c0_71] : memref<1x16x128xf32, #tpu.memory_space<vmem>>, vector<1x16x128xf32>
    %107 = vector.shape_cast %106 : vector<1x16x128xf32> to vector<16x128xf32>
    %108 = vector.shape_cast %105 : vector<16x128xf32> to vector<1x16x128xf32>
    tpu.vector_store %arg7[%c0_69, %c0_70, %c0_71], %108 {strides = array<i32>} : memref<1x16x128xf32, #tpu.memory_space<vmem>>, vector<1x16x128xf32>,
    return
  }
  func.func @transform_0(%arg0: i32, %arg1: i32) -> (i32, i32, i32) {
    %c0_i32 = arith.constant 0 : i32
    %c0_i32_0 = arith.constant 0 : i32
    return %arg0, %arg1, %c0_i32 : i32, i32, i32
  }
  func.func @transform_1(%arg0: i32, %arg1: i32) -> (i32, i32, i32) {
    %c0_i32 = arith.constant 0 : i32
    %c1_i32 = arith.constant 1 : i32
    %c0_i32_0 = arith.constant 0 : i32
    return %arg0, %c0_i32, %c1_i32 : i32, i32, i32
  }
  func.func @transform_2(%arg0: i32, %arg1: i32) -> (i32, i32, i32) {
    %c0_i32 = arith.constant 0 : i32
    %c2_i32 = arith.constant 2 : i32
    %c0_i32_0 = arith.constant 0 : i32
    return %arg0, %c0_i32, %c2_i32 : i32, i32, i32
  }
  func.func @transform_3(%arg0: i32, %arg1: i32) -> (i32, i32) {
    %c0_i32 = arith.constant 0 : i32
    %c0_i32_0 = arith.constant 0 : i32
    %c0_i32_1 = arith.constant 0 : i32
    return %c0_i32, %c0_i32_0 : i32, i32
  }
  func.func @transform_4(%arg0: i32, %arg1: i32) -> (i32, i32) {
    %c0_i32 = arith.constant 0 : i32
    %c0_i32_0 = arith.constant 0 : i32
    %c0_i32_1 = arith.constant 0 : i32
    return %c0_i32, %c0_i32_0 : i32, i32
  }
  func.func @transform_5(%arg0: i32, %arg1: i32) -> (i32, i32, i32) {
    %c0_i32 = arith.constant 0 : i32
    %c0_i32_0 = arith.constant 0 : i32
    return %arg0, %arg1, %c0_i32 : i32, i32, i32
  }
  func.func @transform_6(%arg0: i32, %arg1: i32) -> (i32, i32, i32) {
    %c0_i32 = arith.constant 0 : i32
    %c0_i32_0 = arith.constant 0 : i32
    return %arg0, %arg1, %c0_i32 : i32, i32, i32
  }
}

</mosaic_0001>

<llo_original>
// kernel: mul.9
$region0: #{mul.9}
  #allocation0 [shape = 's32[1]{0}', space=sflag, size = 0x4, scoped, tag = 'scoped memory for mul.9']
  %s0 = inlined_call_operand.vmem [shape: f32[384], index: 0, kind: input, shape index: {}]
  %s1 = inlined_call_operand.vmem [shape: f32[384], index: 1, kind: input, shape index: {}]
  %s2 = inlined_call_operand.vmem [shape: f32[384], index: 2, kind: output, shape index: {}]
  %v3 = vld [vmem:[%s0] sm:$0x7]
  %v4 = vld [vmem:[%s1] sm:$0x7]
  %5 = xla_tuple %v3, %v4
  %6 = xla_tuple %5
  %v7 = vmul.f32 %v3, %v4
  %8 = xla_tuple %v7
  %9 = vst [vmem:[%s2] sm:$0xf] %v7

// kernel: multihead_attention_forward.2
$region0: #{multihead_attention_forward.2}
  #allocation0 [shape = 'u32[]', space=smem, size = 0x4, offset = 0x4, fixed_abs, tag = 'smem constant byte address 0x4 - core index']
  #allocation1 [shape = 'u32[144,128]{1,0:T(1,128)}', space=vmem, size = 0x12000, scoped, tag = 'internal scratch']
  #allocation2 [shape = 'f32[32,384]{1,0:T(8,128)}', space=vmem, size = 0xc000, scoped, tag = 'scratch operand']
  %s0 = inlined_call_operand.vmem [shape: bf16[32,128], index: 0, kind: input, shape index: {}]
  %s1 = inlined_call_operand.vmem [shape: bf16[384,128], index: 1, kind: input, shape index: {}]
  %s2 = inlined_call_operand.vmem [shape: f32[1,384], index: 2, kind: input, shape index: {}]
  %s3 = inlined_call_operand.vmem [shape: bf16[32,384], index: 3, kind: output, shape index: {}]
  %s4 = sld [smem:[#allocation0]]
  $region30: #{multihead_attention_forward.2} parent=0
    _
  %s6 = ssub.s32 1, %s4
  %s7 = scalar_select 0, %s6, %s4
  // Predicated region
  $region2: #{multihead_attention_forward.2} parent=0 // pred_check
    _
  $region3: #{multihead_attention_forward.2} parent=0 // pred_check_branch
    %9 = sbr.rel (0) target = $region5
  $region4: #{multihead_attention_forward.2} parent=0 // pred_region
    _
  $region5: #{multihead_attention_forward.2} parent=0 // pred_fallthru
    _
  // Predicated region
  $region6: #{multihead_attention_forward.2} parent=0 // pred_check
    _
  $region7: #{multihead_attention_forward.2} parent=0 // pred_check_branch
    %11 = sbr.rel (0) target = $region9
  $region8: #{multihead_attention_forward.2} parent=0 // pred_region
    _
  $region9: #{multihead_attention_forward.2} parent=0 // pred_fallthru
    _
  // Predicated region
  $region10: #{multihead_attention_forward.2} parent=0 // pred_check
    _
  $region11: #{multihead_attention_forward.2} parent=0 // pred_check_branch
    %13 = sbr.rel (0) target = $region13
  $region12: #{multihead_attention_forward.2} parent=0 // pred_region
    _
  $region13: #{multihead_attention_forward.2} parent=0 // pred_fallthru
    _
  %p15 = scmp.eq.s32.totalorder 0, 0
  // Predicated region
  $region14: #{multihead_attention_forward.2} parent=0 // pred_check
    %p16 = pneg %p15
  $region15: #{multihead_attention_forward.2} parent=0 // pred_check_branch
    %18 = sbr.rel (%p16) target = $region17
  $region16: #{multihead_attention_forward.2} parent=0 // pred_region
    %19 = vst [vmem:[#allocation2] sm:$0xff] 0.0
    %20 = vst [vmem:[#allocation2 + $0x8] sm:$0xff] 0.0
    %21 = vst [vmem:[#allocation2 + $0x10] sm:$0xff] 0.0
    %22 = vst [vmem:[#allocation2 + $0x18] sm:$0xff] 0.0
    %23 = vst [vmem:[#allocation2 + $0x20] sm:$0xff] 0.0
    %24 = vst [vmem:[#allocation2 + $0x28] sm:$0xff] 0.0
    %25 = vst [vmem:[#allocation2 + $0x30] sm:$0xff] 0.0
    %26 = vst [vmem:[#allocation2 + $0x38] sm:$0xff] 0.0
    %27 = vst [vmem:[#allocation2 + $0x40] sm:$0xff] 0.0
    %28 = vst [vmem:[#allocation2 + $0x48] sm:$0xff] 0.0
    %29 = vst [vmem:[#allocation2 + $0x50] sm:$0xff] 0.0
    %30 = vst [vmem:[#allocation2 + $0x58] sm:$0xff] 0.0
  $region17: #{multihead_attention_forward.2} parent=0 // pred_fallthru
    _
  %v31 = vld [vmem:[#allocation2] sm:$0xff]
  %v32 = vld [vmem:[#allocation2 + $0x8] sm:$0xff]
  %v33 = vld [vmem:[#allocation2 + $0x10] sm:$0xff]
  %v34 = vld [vmem:[#allocation2 + $0x18] sm:$0xff]
  %v35 = vld [vmem:[#allocation2 + $0x20] sm:$0xff]
  %v36 = vld [vmem:[#allocation2 + $0x28] sm:$0xff]
  %v37 = vld [vmem:[#allocation2 + $0x30] sm:$0xff]
  %v38 = vld [vmem:[#allocation2 + $0x38] sm:$0xff]
  %v39 = vld [vmem:[#allocation2 + $0x40] sm:$0xff]
  %v40 = vld [vmem:[#allocation2 + $0x48] sm:$0xff]
  %v41 = vld [vmem:[#allocation2 + $0x50] sm:$0xff]
  %v42 = vld [vmem:[#allocation2 + $0x58] sm:$0xff]
  %v43 = vld [vmem:[%s0] sm:$0xf]
  %v44 = vld [vmem:[%s0 + $0x4] sm:$0xf]
  %v45 = vld [vmem:[%s0 + $0x8] sm:$0xf]
  %v46 = vld [vmem:[%s0 + $0xc] sm:$0xf]
  %v47 = vld [vmem:[%s1] sm:$0xf]
  %v48 = vld [vmem:[%s1 + $0x4] sm:$0xf]
  %v49 = vld [vmem:[%s1 + $0x8] sm:$0xf]
  %v50 = vld [vmem:[%s1 + $0xc] sm:$0xf]
  %v51 = vld [vmem:[%s1 + $0x10] sm:$0xf]
  %v52 = vld [vmem:[%s1 + $0x14] sm:$0xf]
  %v53 = vld [vmem:[%s1 + $0x18] sm:$0xf]
  %v54 = vld [vmem:[%s1 + $0x1c] sm:$0xf]
  %v55 = vld [vmem:[%s1 + $0x20] sm:$0xf]
  %v56 = vld [vmem:[%s1 + $0x24] sm:$0xf]
  %v57 = vld [vmem:[%s1 + $0x28] sm:$0xf]
  %v58 = vld [vmem:[%s1 + $0x2c] sm:$0xf]
  %v59 = vld [vmem:[%s1 + $0x30] sm:$0xf]
  %v60 = vld [vmem:[%s1 + $0x34] sm:$0xf]
  %v61 = vld [vmem:[%s1 + $0x38] sm:$0xf]
  %v62 = vld [vmem:[%s1 + $0x3c] sm:$0xf]
  %v63 = vld [vmem:[%s1 + $0x40] sm:$0xf]
  %v64 = vld [vmem:[%s1 + $0x44] sm:$0xf]
  %v65 = vld [vmem:[%s1 + $0x48] sm:$0xf]
  %v66 = vld [vmem:[%s1 + $0x4c] sm:$0xf]
  %v67 = vld [vmem:[%s1 + $0x50] sm:$0xf]
  %v68 = vld [vmem:[%s1 + $0x54] sm:$0xf]
  %v69 = vld [vmem:[%s1 + $0x58] sm:$0xf]
  %v70 = vld [vmem:[%s1 + $0x5c] sm:$0xf]
  %v71 = vld [vmem:[%s1 + $0x60] sm:$0xf]
  %v72 = vld [vmem:[%s1 + $0x64] sm:$0xf]
  %v73 = vld [vmem:[%s1 + $0x68] sm:$0xf]
  %v74 = vld [vmem:[%s1 + $0x6c] sm:$0xf]
  %v75 = vld [vmem:[%s1 + $0x70] sm:$0xf]
  %v76 = vld [vmem:[%s1 + $0x74] sm:$0xf]
  %v77 = vld [vmem:[%s1 + $0x78] sm:$0xf]
  %v78 = vld [vmem:[%s1 + $0x7c] sm:$0xf]
  %v79 = vld [vmem:[%s1 + $0x80] sm:$0xf]
  %v80 = vld [vmem:[%s1 + $0x84] sm:$0xf]
  %v81 = vld [vmem:[%s1 + $0x88] sm:$0xf]
  %v82 = vld [vmem:[%s1 + $0x8c] sm:$0xf]
  %v83 = vld [vmem:[%s1 + $0x90] sm:$0xf]
  %v84 = vld [vmem:[%s1 + $0x94] sm:$0xf]
  %v85 = vld [vmem:[%s1 + $0x98] sm:$0xf]
  %v86 = vld [vmem:[%s1 + $0x9c] sm:$0xf]
  %v87 = vld [vmem:[%s1 + $0xa0] sm:$0xf]
  %v88 = vld [vmem:[%s1 + $0xa4] sm:$0xf]
  %v89 = vld [vmem:[%s1 + $0xa8] sm:$0xf]
  %v90 = vld [vmem:[%s1 + $0xac] sm:$0xf]
  %v91 = vld [vmem:[%s1 + $0xb0] sm:$0xf]
  %v92 = vld [vmem:[%s1 + $0xb4] sm:$0xf]
  %v93 = vld [vmem:[%s1 + $0xb8] sm:$0xf]
  %v94 = vld [vmem:[%s1 + $0xbc] sm:$0xf]
  %v99 = vunpack.c.l.b16 %v43
  %v100 = vunpack.c.l.b16 %v44
  %v101 = vunpack.c.l.b16 %v45
  %v102 = vunpack.c.l.b16 %v46
  %v103 = vpack.c.b16 %v100, %v99
  %v104 = vpack.c.b16 %v102, %v101
  %v155 = vunpack.c.l.b16 %v47
  %v156 = vunpack.c.l.b16 %v48
  %v157 = vunpack.c.l.b16 %v49
  %v158 = vunpack.c.l.b16 %v50
  %v159 = vunpack.c.l.b16 %v51
  %v160 = vunpack.c.l.b16 %v52
  %v161 = vunpack.c.l.b16 %v53
  %v162 = vunpack.c.l.b16 %v54
  %v163 = vunpack.c.l.b16 %v55
  %v164 = vunpack.c.l.b16 %v56
  %v165 = vunpack.c.l.b16 %v57
  %v166 = vunpack.c.l.b16 %v58
  %v167 = vunpack.c.l.b16 %v59
  %v168 = vunpack.c.l.b16 %v60
  %v169 = vunpack.c.l.b16 %v61
  %v170 = vunpack.c.l.b16 %v62
  %v171 = vunpack.c.l.b16 %v63
  %v172 = vunpack.c.l.b16 %v64
  %v173 = vunpack.c.l.b16 %v65
  %v174 = vunpack.c.l.b16 %v66
  %v175 = vunpack.c.l.b16 %v67
  %v176 = vunpack.c.l.b16 %v68
  %v177 = vunpack.c.l.b16 %v69
  %v178 = vunpack.c.l.b16 %v70
  %v179 = vunpack.c.l.b16 %v71
  %v180 = vunpack.c.l.b16 %v72
  %v181 = vunpack.c.l.b16 %v73
  %v182 = vunpack.c.l.b16 %v74
  %v183 = vunpack.c.l.b16 %v75
  %v184 = vunpack.c.l.b16 %v76
  %v185 = vunpack.c.l.b16 %v77
  %v186 = vunpack.c.l.b16 %v78
  %v187 = vunpack.c.l.b16 %v79
  %v188 = vunpack.c.l.b16 %v80
  %v189 = vunpack.c.l.b16 %v81
  %v190 = vunpack.c.l.b16 %v82
  %v191 = vunpack.c.l.b16 %v83
  %v192 = vunpack.c.l.b16 %v84
  %v193 = vunpack.c.l.b16 %v85
  %v194 = vunpack.c.l.b16 %v86
  %v195 = vunpack.c.l.b16 %v87
  %v196 = vunpack.c.l.b16 %v88
  %v197 = vunpack.c.l.b16 %v89
  %v198 = vunpack.c.l.b16 %v90
  %v199 = vunpack.c.l.b16 %v91
  %v200 = vunpack.c.l.b16 %v92
  %v201 = vunpack.c.l.b16 %v93
  %v202 = vunpack.c.l.b16 %v94
  %v203 = vpack.c.b16 %v156, %v155
  %v204 = vpack.c.b16 %v158, %v157
  %v205 = vpack.c.b16 %v160, %v159
  %v206 = vpack.c.b16 %v162, %v161
  %v207 = vpack.c.b16 %v164, %v163
  %v208 = vpack.c.b16 %v166, %v165
  %v209 = vpack.c.b16 %v168, %v167
  %v210 = vpack.c.b16 %v170, %v169
  %v211 = vpack.c.b16 %v172, %v171
  %v212 = vpack.c.b16 %v174, %v173
  %v213 = vpack.c.b16 %v176, %v175
  %v214 = vpack.c.b16 %v178, %v177
  %v215 = vpack.c.b16 %v180, %v179
  %v216 = vpack.c.b16 %v182, %v181
  %v217 = vpack.c.b16 %v184, %v183
  %v218 = vpack.c.b16 %v186, %v185
  %v219 = vpack.c.b16 %v188, %v187
  %v220 = vpack.c.b16 %v190, %v189
  %v221 = vpack.c.b16 %v192, %v191
  %v222 = vpack.c.b16 %v194, %v193
  %v223 = vpack.c.b16 %v196, %v195
  %v224 = vpack.c.b16 %v198, %v197
  %v225 = vpack.c.b16 %v200, %v199
  %v226 = vpack.c.b16 %v202, %v201
  %251 = vmatprep.subr.bf16.mxu0 0
  %252 = vmatpush1.bf16.xpose.msra.mxu0 %v203
  %253 = vmatprep.subr.bf16.mxu0 0
  %254 = vmatpush1.bf16.xpose.msra.mxu0 %v204
  %255 = vmatprep.subr.bf16.mxu0 0
  %256 = vmatpush1.bf16.xpose.msra.mxu0 %v205
  %257 = vmatprep.subr.bf16.mxu0 0
  %258 = vmatpush1.bf16.xpose.msra.mxu0 %v206
  %259 = vmatprep.subr.bf16.mxu0 0
  %260 = vmatpush1.bf16.xpose.msra.mxu0 %v207
  %261 = vmatprep.subr.bf16.mxu0 0
  %262 = vmatpush1.bf16.xpose.msra.mxu0 %v208
  %263 = vmatprep.subr.bf16.mxu0 0
  %264 = vmatpush1.bf16.xpose.msra.mxu0 %v209
  %265 = vmatprep.subr.bf16.mxu0 0
  %266 = vmatpush1.bf16.xpose.msra.mxu0 %v210
  %267 = vmatprep.subr.bf16.mxu0 0
  %268 = vmatpush1.bf16.xpose.msra.mxu0 %v211
  %269 = vmatprep.subr.bf16.mxu0 0
  %270 = vmatpush1.bf16.xpose.msra.mxu0 %v212
  %271 = vmatprep.subr.bf16.mxu0 0
  %272 = vmatpush1.bf16.xpose.msra.mxu0 %v213
  %273 = vmatprep.subr.bf16.mxu0 0
  %274 = vmatpush1.bf16.xpose.msra.mxu0 %v214
  %275 = vmatprep.subr.bf16.mxu0 0
  %276 = vmatpush1.bf16.xpose.msra.mxu0 %v215
  %277 = vmatprep.subr.bf16.mxu0 0
  %278 = vmatpush1.bf16.xpose.msra.mxu0 %v216
  %279 = vmatprep.subr.bf16.mxu0 0
  %280 = vmatpush1.bf16.xpose.msra.mxu0 %v217
  %281 = vmatprep.subr.bf16.mxu0 0
  %282 = vmatpush1.bf16.xpose.msra.mxu0 %v218
  %283 = vmatprep.mubr.bf16.mxu0 0
  %284 = vmatmul.mubr.bf16.gmra.mrb[0].mxu0 %v103
  %v285 = vpop.f32.mrb[0].mxu0
  %v286 = vadd.f32 0.0, %v285
  %v287 = vpop.f32.mrb[0].mxu0
  %v288 = vadd.f32 0.0, %v287
  %v289 = vpop.f32.mrb[0].mxu0
  %v290 = vadd.f32 0.0, %v289
  %v291 = vpop.f32.mrb[0].mxu0
  %v292 = vadd.f32 0.0, %v291
  %293 = vmatprep.mubr.bf16.mxu0 0
  %294 = vmatmul.mubr.bf16.gmra.mrb[0].mxu0 %v104
  %v295 = vpop.f32.mrb[0].mxu0
  %v296 = vadd.f32 0.0, %v295
  %v297 = vpop.f32.mrb[0].mxu0
  %v298 = vadd.f32 0.0, %v297
  %v299 = vpop.f32.mrb[0].mxu0
  %v300 = vadd.f32 0.0, %v299
  %v301 = vpop.f32.mrb[0].mxu0
  %v302 = vadd.f32 0.0, %v301
  %303 = vdwg.mxu0
  %304 = vmatprep.subr.bf16.mxu0 0
  %305 = vmatpush1.bf16.xpose.msra.mxu0 %v219
  %306 = vmatprep.subr.bf16.mxu0 0
  %307 = vmatpush1.bf16.xpose.msra.mxu0 %v220
  %308 = vmatprep.subr.bf16.mxu0 0
  %309 = vmatpush1.bf16.xpose.msra.mxu0 %v221
  %310 = vmatprep.subr.bf16.mxu0 0
  %311 = vmatpush1.bf16.xpose.msra.mxu0 %v222
  %312 = vmatprep.subr.bf16.mxu0 0
  %313 = vmatpush1.bf16.xpose.msra.mxu0 %v223
  %314 = vmatprep.subr.bf16.mxu0 0
  %315 = vmatpush1.bf16.xpose.msra.mxu0 %v224
  %316 = vmatprep.subr.bf16.mxu0 0
  %317 = vmatpush1.bf16.xpose.msra.mxu0 %v225
  %318 = vmatprep.subr.bf16.mxu0 0
  %319 = vmatpush1.bf16.xpose.msra.mxu0 %v226
  %320 = vmatprep.subr.bf16.mxu0 0
  %321 = vmatpush1.bf16.xpose.msra.mxu0 0
  %322 = vmatprep.subr.bf16.mxu0 0
  %323 = vmatpush1.bf16.xpose.msra.mxu0 0
  %324 = vmatprep.subr.bf16.mxu0 0
  %325 = vmatpush1.bf16.xpose.msra.mxu0 0
  %326 = vmatprep.subr.bf16.mxu0 0
  %327 = vmatpush1.bf16.xpose.msra.mxu0 0
  %328 = vmatprep.subr.bf16.mxu0 0
  %329 = vmatpush1.bf16.xpose.msra.mxu0 0
  %330 = vmatprep.subr.bf16.mxu0 0
  %331 = vmatpush1.bf16.xpose.msra.mxu0 0
  %332 = vmatprep.subr.bf16.mxu0 0
  %333 = vmatpush1.bf16.xpose.msra.mxu0 0
  %334 = vmatprep.subr.bf16.mxu0 0
  %335 = vmatpush1.bf16.xpose.msra.mxu0 0
  %336 = vmatprep.mubr.bf16.mxu0 0
  %337 = vmatmul.mubr.bf16.gmra.mrb[0].mxu0 %v103
  %v338 = vpop.f32.mrb[0].mxu0
  %v339 = vadd.f32 0.0, %v338
  %v340 = vpop.f32.mrb[0].mxu0
  %v341 = vpop.f32.mrb[0].mxu0
  %v342 = vadd.f32 0.0, %v341
  %v343 = vpop.f32.mrb[0].mxu0
  %344 = vmatprep.mubr.bf16.mxu0 0
  %345 = vmatmul.mubr.bf16.gmra.mrb[0].mxu0 %v104
  %v346 = vpop.f32.mrb[0].mxu0
  %v347 = vadd.f32 0.0, %v346
  %v348 = vpop.f32.mrb[0].mxu0
  %v349 = vpop.f32.mrb[0].mxu0
  %v350 = vadd.f32 0.0, %v349
  %v351 = vpop.f32.mrb[0].mxu0
  %352 = vdwg.mxu0
  %v353 = vadd.f32 %v31, %v286
  %v354 = vadd.f32 %v32, %v288
  %v355 = vadd.f32 %v33, %v339
  %v356 = vadd.f32 %v34, %v290
  %v357 = vadd.f32 %v35, %v292
  %v358 = vadd.f32 %v36, %v342
  %v359 = vadd.f32 %v37, %v296
  %v360 = vadd.f32 %v38, %v298
  %v361 = vadd.f32 %v39, %v347
  %v362 = vadd.f32 %v40, %v300
  %v363 = vadd.f32 %v41, %v302
  %v364 = vadd.f32 %v42, %v350
  %365 = vst [vmem:[#allocation2] sm:$0xff] %v353
  %366 = vst [vmem:[#allocation2 + $0x8] sm:$0xff] %v354
  %367 = vst [vmem:[#allocation2 + $0x10] sm:$0xff] %v355
  %368 = vst [vmem:[#allocation2 + $0x18] sm:$0xff] %v356
  %369 = vst [vmem:[#allocation2 + $0x20] sm:$0xff] %v357
  %370 = vst [vmem:[#allocation2 + $0x28] sm:$0xff] %v358
  %371 = vst [vmem:[#allocation2 + $0x30] sm:$0xff] %v359
  %372 = vst [vmem:[#allocation2 + $0x38] sm:$0xff] %v360
  %373 = vst [vmem:[#allocation2 + $0x40] sm:$0xff] %v361
  %374 = vst [vmem:[#allocation2 + $0x48] sm:$0xff] %v362
  %375 = vst [vmem:[#allocation2 + $0x50] sm:$0xff] %v363
  %376 = vst [vmem:[#allocation2 + $0x58] sm:$0xff] %v364
  // Predicated region
  $region18: #{multihead_attention_forward.2} parent=0 // pred_check
    %p377 = pneg %p15
  $region19: #{multihead_attention_forward.2} parent=0 // pred_check_branch
    %379 = sbr.rel (%p377) target = $region21
  $region20: #{multihead_attention_forward.2} parent=0 // pred_region
    %v380 = vld [vmem:[#allocation2] sm:$0xff]
    %v381 = vld [vmem:[#allocation2 + $0x8] sm:$0xff]
    %v382 = vld [vmem:[#allocation2 + $0x10] sm:$0xff]
    %v383 = vld [vmem:[#allocation2 + $0x18] sm:$0xff]
    %v384 = vld [vmem:[#allocation2 + $0x20] sm:$0xff]
    %v385 = vld [vmem:[#allocation2 + $0x28] sm:$0xff]
    %v386 = vld [vmem:[#allocation2 + $0x30] sm:$0xff]
    %v387 = vld [vmem:[#allocation2 + $0x38] sm:$0xff]
    %v388 = vld [vmem:[#allocation2 + $0x40] sm:$0xff]
    %v389 = vld [vmem:[#allocation2 + $0x48] sm:$0xff]
    %v390 = vld [vmem:[#allocation2 + $0x50] sm:$0xff]
    %v391 = vld [vmem:[#allocation2 + $0x58] sm:$0xff]
    %v392 = vld [vmem:[%s2] sm:$0x7]
    %v394 = vlaneseq
    %v395 = vshrl.u32 %v394, 7
    %v396 = vsub.s32 0, %v395
    %v397 = vrot.slane %v392, %v396
    %v398 = vlaneseq
    %v399 = vshrl.u32 %v398, 7
    %v400 = vsub.s32 1, %v399
    %v401 = vrot.slane %v392, %v400
    %v402 = vlaneseq
    %v403 = vshrl.u32 %v402, 7
    %v404 = vsub.s32 2, %v403
    %v405 = vrot.slane %v392, %v404
    %v409 = vadd.f32 %v380, %v397
    %v410 = vadd.f32 %v381, %v401
    %v411 = vadd.f32 %v382, %v405
    %v412 = vadd.f32 %v383, %v397
    %v413 = vadd.f32 %v384, %v401
    %v414 = vadd.f32 %v385, %v405
    %v415 = vadd.f32 %v386, %v397
    %v416 = vadd.f32 %v387, %v401
    %v417 = vadd.f32 %v388, %v405
    %v418 = vadd.f32 %v389, %v397
    %v419 = vadd.f32 %v390, %v401
    %v420 = vadd.f32 %v391, %v405
    %v421 = vpack.c.bf16 %v412, %v409
    %v422 = vpack.c.bf16 %v413, %v410
    %v423 = vpack.c.bf16 %v414, %v411
    %v424 = vpack.c.bf16 %v418, %v415
    %v425 = vpack.c.bf16 %v419, %v416
    %v426 = vpack.c.bf16 %v420, %v417
    %v433 = vunpack.c.l.b16 %v421
    %v434 = vunpack.c.l.b16 %v422
    %v435 = vunpack.c.l.b16 %v423
    %v436 = vunpack.c.h.b16 %v421
    %v437 = vunpack.c.h.b16 %v422
    %v438 = vunpack.c.h.b16 %v423
    %v439 = vunpack.c.l.b16 %v424
    %v440 = vunpack.c.l.b16 %v425
    %v441 = vunpack.c.l.b16 %v426
    %v442 = vunpack.c.h.b16 %v424
    %v443 = vunpack.c.h.b16 %v425
    %v444 = vunpack.c.h.b16 %v426
    %v445 = vpack.c.b16 %v434, %v433
    %v446 = vpack.c.b16 %v435, %v435
    %v447 = vpack.c.b16 %v437, %v436
    %v448 = vpack.c.b16 %v438, %v438
    %v449 = vpack.c.b16 %v440, %v439
    %v450 = vpack.c.b16 %v441, %v441
    %v451 = vpack.c.b16 %v443, %v442
    %v452 = vpack.c.b16 %v444, %v444
    %461 = vst [vmem:[%s3] sm:$0xff] %v445
    %462 = vst [vmem:[%s3 + $0x8] sm:$0xf] %v446
    %463 = vst [vmem:[%s3 + $0xc] sm:$0xff] %v447
    %464 = vst [vmem:[%s3 + $0x14] sm:$0xf] %v448
    %465 = vst [vmem:[%s3 + $0x18] sm:$0xff] %v449
    %466 = vst [vmem:[%s3 + $0x20] sm:$0xf] %v450
    %467 = vst [vmem:[%s3 + $0x24] sm:$0xff] %v451
    %468 = vst [vmem:[%s3 + $0x2c] sm:$0xf] %v452
  $region21: #{multihead_attention_forward.2} parent=0 // pred_fallthru
    _
  // Predicated region
  $region22: #{multihead_attention_forward.2} parent=0 // pred_check
    _
  $region23: #{multihead_attention_forward.2} parent=0 // pred_check_branch
    %470 = sbr.rel (0) target = $region25
  $region24: #{multihead_attention_forward.2} parent=0 // pred_region
    _
  $region25: #{multihead_attention_forward.2} parent=0 // pred_fallthru
    _
  // Predicated region
  $region26: #{multihead_attention_forward.2} parent=0 // pred_check
    _
  $region27: #{multihead_attention_forward.2} parent=0 // pred_check_branch
    %472 = sbr.rel (0) target = $region29
  $region28: #{multihead_attention_forward.2} parent=0 // pred_region
    _
  $region29: #{multihead_attention_forward.2} parent=0 // pred_fallthru
    _

// kernel: multihead_attention_forward.3
$region0: #{multihead_attention_forward.3}
  #allocation0 [shape = 'u32[]', space=smem, size = 0x4, offset = 0x4, fixed_abs, tag = 'smem constant byte address 0x4 - core index']
  #allocation1 [shape = 'u32[144,128]{1,0:T(1,128)}', space=vmem, size = 0x12000, scoped, tag = 'internal scratch']
  %s0 = inlined_call_operand.vmem [shape: bf16[2,16,384], index: 0, kind: input, shape index: {}, may-alias: {0,1,2}]
  %s1 = inlined_call_operand.vmem [shape: bf16[2,16,384], index: 1, kind: input, shape index: {}, may-alias: {0,1,2}]
  %s2 = inlined_call_operand.vmem [shape: bf16[2,16,384], index: 2, kind: input, shape index: {}, may-alias: {0,1,2}]
  %s3 = inlined_call_operand.vmem [shape: bf16[128,128], index: 3, kind: input, shape index: {}]
  %s4 = inlined_call_operand.vmem [shape: f32[1,128], index: 4, kind: input, shape index: {}]
  %s5 = inlined_call_operand.vmem [shape: f32[2,16,128], index: 5, kind: output, shape index: {0}]
  %s6 = inlined_call_operand.hbm [shape: f32[2,16,16], index: 6, kind: output, shape index: {1}]
  %7 = xla_tuple %s5, %s6
  %s8 = sld [smem:[#allocation0]]
  $region184: #{multihead_attention_forward.3} parent=0
    _
  %s10 = ssub.s32 1, %s8
  %s11 = scalar_select 0, %s10, %s8
  $region1: #{multihead_attention_forward.3} parent=0
    #allocation2 [shape = 'u8[8192]{0}', space=vmem, size = 0x2000, scoped, tag = 'input window, operand 0']
    #allocation3 [shape = 'u8[8192]{0}', space=vmem, size = 0x2000, scoped, tag = 'input window, operand 1']
    #allocation4 [shape = 'u8[8192]{0}', space=vmem, size = 0x2000, scoped, tag = 'input window, operand 2']
    #allocation5 [shape = 'u8[16384]{0}', space=vmem, size = 0x4000, scoped, tag = 'output window, operand 1']
    #allocation6 [shape = 's32[2]{0}', space=sflag, size = 0x8, scoped, tag = 'scoped memory for multihead_attention_forward.3']
    %12 = vsyncpa [#allocation6], 0
    %s13 = scalar_lea.sflag [#allocation6], 1
    %14 = vsyncpa %s13, 0
    loop: start=0, step=1, limit=4
    $region2: #{multihead_attention_forward.3} parent=1 // loop_pre_header
      _
    $region3: #{multihead_attention_forward.3} parent=1 // loop_header
      %s16 = sphi 0, %s20
      %p17 = scmp.ge.s32.totalorder %s16, 4
      %s23 = sphi 0, %s35
      %s24 = sphi 0, %s31
      %s25 = sphi 0, %s23
      %s26 = sphi 0, %s24
      %s27 = sphi 0, %s25
      %s28 = sphi 0, %s26
      %s40 = sphi 0, %s42
      %s43 = sphi 0, %s40
      %s44 = sphi 0, %s43
      %s60 = sphi 0, %s44
      %s66 = sphi 0, %s68
      %s69 = sphi 0, %s66
      %s70 = sphi 0, %s69
      %s86 = sphi 0, %s70
      %s92 = sphi 0, %s94
      %s95 = sphi 0, %s92
      %s96 = sphi 0, %s95
      %s112 = sphi 0, %s96
      %s116 = sphi 0, %s116
      %s118 = sphi 0, %s116
      %s119 = sphi 0, %s118
      %s133 = sphi 0, %s119
      %s137 = sphi 0, %s137
      %s139 = sphi 0, %s137
      %s140 = sphi 0, %s139
      %s154 = sphi 0, %s140
      %s162 = sphi 0, %s164
      %s165 = sphi 0, %s162
      %s166 = sphi 0, %s165
      %s182 = sphi 0, %s166
      %s190 = sphi 0, %s192
      %s193 = sphi 0, %s190
      %s194 = sphi 0, %s193
      %s210 = sphi 0, %s194
    $region4: #{multihead_attention_forward.3} parent=1 // loop_header_branch
      %19 = sbr.rel (%p17) target = $region8
    $region5: #{multihead_attention_forward.3} parent=1 // loop_body
      %s21 = ssub.s32 %s16, 1
      %s22 = ssub.s32 %s16, 2
      %s29 = sadd.s32 1, %s24
      %p30 = scmp.ge.s32.totalorder %s29, 1
      %s31 = scalar_select %p30, 0, %s29
      %s32 = sadd.s32 1, %s23
      %s33 = scalar_select %p30, %s32, %s23
      %p34 = scmp.ge.s32.totalorder %s33, 2
      %s35 = scalar_select %p34, 0, %s33
      %s36 = ssub.s32 %s23, %s35
      %s37 = ssub.s32 %s24, %s31
      %s38 = sor.u32 %s36, %s37
      %p39 = scmp.eq.s32.totalorder %s38, 0
      %s41 = sadd.s32 %s40, 1
      %s42 = scalar_select %p39, %s40, %s41
      %p45 = pneg %p39
      %p46 = scmp.eq.s32.totalorder %s16, 1
      %p47 = por %p45, %p46
      %p48 = scmp.ne.s32.totalorder %s40, %s43
      %p49 = scmp.eq.s32.totalorder %s16, 0
      %p50 = por %p48, %p49
      %p51 = scmp.ne.s32.totalorder %s40, %s43
      %p52 = scmp.eq.s32.totalorder %s21, 1
      %p53 = por %p51, %p52
      %p54 = scmp.ne.s32.totalorder %s43, %s44
      %p55 = scmp.eq.s32.totalorder %s21, 0
      %p56 = por %p54, %p55
      %p57 = scmp.ne.s32.totalorder %s43, %s44
      %p58 = scmp.eq.s32.totalorder %s22, 1
      %p59 = por %p57, %p58
      %p61 = scmp.ne.s32.totalorder %s44, %s60
      %p62 = scmp.eq.s32.totalorder %s22, 0
      %p63 = por %p61, %p62
      %s64 = ssub.s32 %s23, %s35
      %p65 = scmp.eq.s32.totalorder %s64, 0
      %s67 = sadd.s32 %s66, 1
      %s68 = scalar_select %p65, %s66, %s67
      %p71 = pneg %p65
      %p72 = scmp.eq.s32.totalorder %s16, 1
      %p73 = por %p71, %p72
      %p74 = scmp.ne.s32.totalorder %s66, %s69
      %p75 = scmp.eq.s32.totalorder %s16, 0
      %p76 = por %p74, %p75
      %p77 = scmp.ne.s32.totalorder %s66, %s69
      %p78 = scmp.eq.s32.totalorder %s21, 1
      %p79 = por %p77, %p78
      %p80 = scmp.ne.s32.totalorder %s69, %s70
      %p81 = scmp.eq.s32.totalorder %s21, 0
      %p82 = por %p80, %p81
      %p83 = scmp.ne.s32.totalorder %s69, %s70
      %p84 = scmp.eq.s32.totalorder %s22, 1
      %p85 = por %p83, %p84
      %p87 = scmp.ne.s32.totalorder %s70, %s86
      %p88 = scmp.eq.s32.totalorder %s22, 0
      %p89 = por %p87, %p88
      %s90 = ssub.s32 %s23, %s35
      %p91 = scmp.eq.s32.totalorder %s90, 0
      %s93 = sadd.s32 %s92, 1
      %s94 = scalar_select %p91, %s92, %s93
      %p97 = pneg %p91
      %p98 = scmp.eq.s32.totalorder %s16, 1
      %p99 = por %p97, %p98
      %p100 = scmp.ne.s32.totalorder %s92, %s95
      %p101 = scmp.eq.s32.totalorder %s16, 0
      %p102 = por %p100, %p101
      %p103 = scmp.ne.s32.totalorder %s92, %s95
      %p104 = scmp.eq.s32.totalorder %s21, 1
      %p105 = por %p103, %p104
      %p106 = scmp.ne.s32.totalorder %s95, %s96
      %p107 = scmp.eq.s32.totalorder %s21, 0
      %p108 = por %p106, %p107
      %p109 = scmp.ne.s32.totalorder %s95, %s96
      %p110 = scmp.eq.s32.totalorder %s22, 1
      %p111 = por %p109, %p110
      %p113 = scmp.ne.s32.totalorder %s96, %s112
      %p114 = scmp.eq.s32.totalorder %s22, 0
      %p115 = por %p113, %p114
      %s117 = sadd.s32 %s116, 1
      %p120 = scmp.eq.s32.totalorder %s16, 1
      %p121 = scmp.ne.s32.totalorder %s116, %s118
      %p122 = scmp.eq.s32.totalorder %s16, 0
      %p123 = por %p121, %p122
      %p124 = scmp.ne.s32.totalorder %s116, %s118
      %p125 = scmp.eq.s32.totalorder %s21, 1
      %p126 = por %p124, %p125
      %p127 = scmp.ne.s32.totalorder %s118, %s119
      %p128 = scmp.eq.s32.totalorder %s21, 0
      %p129 = por %p127, %p128
      %p130 = scmp.ne.s32.totalorder %s118, %s119
      %p131 = scmp.eq.s32.totalorder %s22, 1
      %p132 = por %p130, %p131
      %p134 = scmp.ne.s32.totalorder %s119, %s133
      %p135 = scmp.eq.s32.totalorder %s22, 0
      %p136 = por %p134, %p135
      %s138 = sadd.s32 %s137, 1
      %p141 = scmp.eq.s32.totalorder %s16, 1
      %p142 = scmp.ne.s32.totalorder %s137, %s139
      %p143 = scmp.eq.s32.totalorder %s16, 0
      %p144 = por %p142, %p143
      %p145 = scmp.ne.s32.totalorder %s137, %s139
      %p146 = scmp.eq.s32.totalorder %s21, 1
      %p147 = por %p145, %p146
      %p148 = scmp.ne.s32.totalorder %s139, %s140
      %p149 = scmp.eq.s32.totalorder %s21, 0
      %p150 = por %p148, %p149
      %p151 = scmp.ne.s32.totalorder %s139, %s140
      %p152 = scmp.eq.s32.totalorder %s22, 1
      %p153 = por %p151, %p152
      %p155 = scmp.ne.s32.totalorder %s140, %s154
      %p156 = scmp.eq.s32.totalorder %s22, 0
      %p157 = por %p155, %p156
      %s158 = ssub.s32 %s23, %s35
      %s159 = ssub.s32 %s24, %s31
      %s160 = sor.u32 %s158, %s159
      %p161 = scmp.eq.s32.totalorder %s160, 0
      %s163 = sadd.s32 %s162, 1
      %s164 = scalar_select %p161, %s162, %s163
      %p167 = pneg %p161
      %p168 = scmp.eq.s32.totalorder %s16, 1
      %p169 = por %p167, %p168
      %p170 = scmp.ne.s32.totalorder %s162, %s165
      %p171 = scmp.eq.s32.totalorder %s16, 0
      %p172 = por %p170, %p171
      %p173 = scmp.ne.s32.totalorder %s162, %s165
      %p174 = scmp.eq.s32.totalorder %s21, 1
      %p175 = por %p173, %p174
      %p176 = scmp.ne.s32.totalorder %s165, %s166
      %p177 = scmp.eq.s32.totalorder %s21, 0
      %p178 = por %p176, %p177
      %p179 = scmp.ne.s32.totalorder %s165, %s166
      %p180 = scmp.eq.s32.totalorder %s22, 1
      %p181 = por %p179, %p180
      %p183 = scmp.ne.s32.totalorder %s166, %s182
      %p184 = scmp.eq.s32.totalorder %s22, 0
      %p185 = por %p183, %p184
      %s186 = ssub.s32 %s23, %s35
      %s187 = ssub.s32 %s24, %s31
      %s188 = sor.u32 %s186, %s187
      %p189 = scmp.eq.s32.totalorder %s188, 0
      %s191 = sadd.s32 %s190, 1
      %s192 = scalar_select %p189, %s190, %s191
      %p195 = pneg %p189
      %p196 = scmp.eq.s32.totalorder %s16, 1
      %p197 = por %p195, %p196
      %p198 = scmp.ne.s32.totalorder %s190, %s193
      %p199 = scmp.eq.s32.totalorder %s16, 0
      %p200 = por %p198, %p199
      %p201 = scmp.ne.s32.totalorder %s190, %s193
      %p202 = scmp.eq.s32.totalorder %s21, 1
      %p203 = por %p201, %p202
      %p204 = scmp.ne.s32.totalorder %s193, %s194
      %p205 = scmp.eq.s32.totalorder %s21, 0
      %p206 = por %p204, %p205
      %p207 = scmp.ne.s32.totalorder %s193, %s194
      %p208 = scmp.eq.s32.totalorder %s22, 1
      %p209 = por %p207, %p208
      %p211 = scmp.ne.s32.totalorder %s194, %s210
      %p212 = scmp.eq.s32.totalorder %s22, 0
      %p213 = por %p211, %p212
      %p214 = scmp.le.s32.totalorder 1, %s16
      %p215 = scmp.lt.s32.totalorder %s16, 3
      %p216 = pnand %p214, %p215
      %p217 = pneg %p216
      // Predicated region
      $region9: #{multihead_attention_forward.3} parent=5 // pred_check
        _
      $region10: #{multihead_attention_forward.3} parent=5 // pred_check_branch
        %219 = sbr.rel (%p216) target = $region12
      $region11: #{multihead_attention_forward.3} parent=5 // pred_region
        %s220 = ssub.s32 %s16, 1
        // Predicated region
        $region13: #{multihead_attention_forward.3} parent=11 // pred_check
          %p221 = pneg %p129
        $region14: #{multihead_attention_forward.3} parent=11 // pred_check_branch
          %223 = sbr.rel (%p221) target = $region16
        $region15: #{multihead_attention_forward.3} parent=11 // pred_region
          _
        $region16: #{multihead_attention_forward.3} parent=11 // pred_fallthru
          _
        // Predicated region
        $region17: #{multihead_attention_forward.3} parent=11 // pred_check
          %p224 = pneg %p150
        $region18: #{multihead_attention_forward.3} parent=11 // pred_check_branch
          %226 = sbr.rel (%p224) target = $region20
        $region19: #{multihead_attention_forward.3} parent=11 // pred_region
          _
        $region20: #{multihead_attention_forward.3} parent=11 // pred_fallthru
          _
      $region12: #{multihead_attention_forward.3} parent=5 // pred_fallthru
        _
      %p227 = scmp.lt.s32.totalorder %s16, 2
      // Predicated region
      $region21: #{multihead_attention_forward.3} parent=5 // pred_check
        %p228 = pneg %p227
      $region22: #{multihead_attention_forward.3} parent=5 // pred_check_branch
        %230 = sbr.rel (%p228) target = $region24
      $region23: #{multihead_attention_forward.3} parent=5 // pred_region
        // Predicated region
        $region25: #{multihead_attention_forward.3} parent=23 // pred_check
          %p231 = pneg %p50
        $region26: #{multihead_attention_forward.3} parent=23 // pred_check_branch
          %233 = sbr.rel (%p231) target = $region28
        $region27: #{multihead_attention_forward.3} parent=23 // pred_region
          %s234 = sand.u32 %s40, 1
          %s235 = sand.u32 %s40, 1
          %s236 = smul.addr %s235, 8
          %s237 = scalar_lea.vmem [#allocation2], %s236
          %s238 = smul.u32 2, %s24
          %s239 = smul.addr %s238, 3
          %s240 = smul.addr %s23, 6
          %s241 = sadd.s32 %s239, %s240
          %s242 = smul.addr %s241, 4
          %s243 = scalar_lea.vmem %s0, %s242
          // Predicated region
          $region29: #{multihead_attention_forward.3} parent=27 // pred_check
            _
          $region30: #{multihead_attention_forward.3} parent=27 // pred_check_branch
            %245 = sbr.rel (0) target = $region32
          $region31: #{multihead_attention_forward.3} parent=27 // pred_region
            // Predicated region
            $region33: #{multihead_attention_forward.3} parent=31 // pred_check
              _
            $region34: #{multihead_attention_forward.3} parent=31 // pred_check_branch
              %247 = sbr.rel target = $region36
            $region35: #{multihead_attention_forward.3} parent=31 // pred_region
              // Predicated region
              $region48: #{multihead_attention_forward.3} parent=35 // pred_check
                _
              $region49: #{multihead_attention_forward.3} parent=35 // pred_check_branch
                %264 = sbr.rel (0) target = $region51
              $region50: #{multihead_attention_forward.3} parent=35 // pred_region
                loop: start=0, step=1, limit=1
                $region52: #{multihead_attention_forward.3} parent=50 // loop_pre_header
                  _
                $region53: #{multihead_attention_forward.3} parent=50 // loop_header
                  %s266 = sphi 0, %s270
                  %p267 = scmp.ge.s32.totalorder %s266, 1
                  %s271 = sphi %s243, %s243
                  %s272 = sphi %s237, %s237
                $region54: #{multihead_attention_forward.3} parent=50 // loop_header_branch
                  %269 = sbr.rel (%p267) target = $region58
                $region55: #{multihead_attention_forward.3} parent=50 // loop_body
                  _
                $region56: #{multihead_attention_forward.3} parent=50 // loop_footer
                  %s270 = sadd.s32 1, %s266
                $region57: #{multihead_attention_forward.3} parent=50 // loop_footer_branch
                  %265 = sbr.rel target = $region53
                $region58: #{multihead_attention_forward.3} parent=50 // loop_exit
                  _
                loop: start=0, step=1, limit=1
                $region59: #{multihead_attention_forward.3} parent=50 // loop_pre_header
                  _
                $region60: #{multihead_attention_forward.3} parent=50 // loop_header
                  %s275 = sphi 0, %s279
                  %p276 = scmp.ge.s32.totalorder %s275, 1
                  %s280 = sphi %s243, %s243
                  %s281 = sphi %s237, %s237
                $region61: #{multihead_attention_forward.3} parent=50 // loop_header_branch
                  %278 = sbr.rel (%p276) target = $region65
                $region62: #{multihead_attention_forward.3} parent=50 // loop_body
                  %v282 = vld [vmem:[%s280] sm:$0xf]
                  %283 = vst [vmem:[%s281] sm:$0xf] %v282
                  %v284 = vld [vmem:[%s280 + $0xc] sm:$0xf]
                  %285 = vst [vmem:[%s281 + $0x4] sm:$0xf] %v284
                $region63: #{multihead_attention_forward.3} parent=50 // loop_footer
                  %s279 = sadd.s32 1, %s275
                $region64: #{multihead_attention_forward.3} parent=50 // loop_footer_branch
                  %274 = sbr.rel target = $region60
                $region65: #{multihead_attention_forward.3} parent=50 // loop_exit
                  _
              $region51: #{multihead_attention_forward.3} parent=35 // pred_fallthru
                _
            $region36: #{multihead_attention_forward.3} parent=31 // pred_fallthru
              _
            // Predicated region
            $region37: #{multihead_attention_forward.3} parent=31 // pred_check
              _
            $region38: #{multihead_attention_forward.3} parent=31 // pred_check_branch
              %249 = sbr.rel (0) target = $region40
            $region39: #{multihead_attention_forward.3} parent=31 // pred_region
              loop: start=0, step=1, limit=1
              $region41: #{multihead_attention_forward.3} parent=39 // loop_pre_header
                _
              $region42: #{multihead_attention_forward.3} parent=39 // loop_header
                %s252 = sphi 0, %s256
                %p253 = scmp.ge.s32.totalorder %s252, 1
                %s257 = sphi %s243, %s243
                %s258 = sphi %s237, %s237
              $region43: #{multihead_attention_forward.3} parent=39 // loop_header_branch
                %255 = sbr.rel (%p253) target = $region47
              $region44: #{multihead_attention_forward.3} parent=39 // loop_body
                %v259 = vld [vmem:[%s257] sm:$0xf]
                %260 = vst [vmem:[%s258] sm:$0xf] %v259
                %v261 = vld [vmem:[%s257 + $0xc] sm:$0xf]
                %262 = vst [vmem:[%s258 + $0x4] sm:$0xf] %v261
              $region45: #{multihead_attention_forward.3} parent=39 // loop_footer
                %s256 = sadd.s32 1, %s252
              $region46: #{multihead_attention_forward.3} parent=39 // loop_footer_branch
                %251 = sbr.rel target = $region42
              $region47: #{multihead_attention_forward.3} parent=39 // loop_exit
                _
            $region40: #{multihead_attention_forward.3} parent=31 // pred_fallthru
              _
          $region32: #{multihead_attention_forward.3} parent=27 // pred_fallthru
            _
          %286 = vnop
        $region28: #{multihead_attention_forward.3} parent=23 // pred_fallthru
          _
        // Predicated region
        $region66: #{multihead_attention_forward.3} parent=23 // pred_check
          %p287 = pneg %p76
        $region67: #{multihead_attention_forward.3} parent=23 // pred_check_branch
          %289 = sbr.rel (%p287) target = $region69
        $region68: #{multihead_attention_forward.3} parent=23 // pred_region
          %s290 = sand.u32 %s66, 1
          %s291 = sand.u32 %s66, 1
          %s292 = smul.addr %s291, 8
          %s293 = scalar_lea.vmem [#allocation3], %s292
          %s294 = smul.addr %s23, 6
          %s295 = sadd.s32 1, %s294
          %s296 = smul.addr %s295, 4
          %s297 = scalar_lea.vmem %s1, %s296
          // Predicated region
          $region70: #{multihead_attention_forward.3} parent=68 // pred_check
            _
          $region71: #{multihead_attention_forward.3} parent=68 // pred_check_branch
            %299 = sbr.rel (0) target = $region73
          $region72: #{multihead_attention_forward.3} parent=68 // pred_region
            // Predicated region
            $region74: #{multihead_attention_forward.3} parent=72 // pred_check
              _
            $region75: #{multihead_attention_forward.3} parent=72 // pred_check_branch
              %301 = sbr.rel target = $region77
            $region76: #{multihead_attention_forward.3} parent=72 // pred_region
              // Predicated region
              $region89: #{multihead_attention_forward.3} parent=76 // pred_check
                _
              $region90: #{multihead_attention_forward.3} parent=76 // pred_check_branch
                %318 = sbr.rel (0) target = $region92
              $region91: #{multihead_attention_forward.3} parent=76 // pred_region
                loop: start=0, step=1, limit=1
                $region93: #{multihead_attention_forward.3} parent=91 // loop_pre_header
                  _
                $region94: #{multihead_attention_forward.3} parent=91 // loop_header
                  %s320 = sphi 0, %s324
                  %p321 = scmp.ge.s32.totalorder %s320, 1
                  %s325 = sphi %s297, %s297
                  %s326 = sphi %s293, %s293
                $region95: #{multihead_attention_forward.3} parent=91 // loop_header_branch
                  %323 = sbr.rel (%p321) target = $region99
                $region96: #{multihead_attention_forward.3} parent=91 // loop_body
                  _
                $region97: #{multihead_attention_forward.3} parent=91 // loop_footer
                  %s324 = sadd.s32 1, %s320
                $region98: #{multihead_attention_forward.3} parent=91 // loop_footer_branch
                  %319 = sbr.rel target = $region94
                $region99: #{multihead_attention_forward.3} parent=91 // loop_exit
                  _
                loop: start=0, step=1, limit=1
                $region100: #{multihead_attention_forward.3} parent=91 // loop_pre_header
                  _
                $region101: #{multihead_attention_forward.3} parent=91 // loop_header
                  %s329 = sphi 0, %s333
                  %p330 = scmp.ge.s32.totalorder %s329, 1
                  %s334 = sphi %s297, %s297
                  %s335 = sphi %s293, %s293
                $region102: #{multihead_attention_forward.3} parent=91 // loop_header_branch
                  %332 = sbr.rel (%p330) target = $region106
                $region103: #{multihead_attention_forward.3} parent=91 // loop_body
                  %v336 = vld [vmem:[%s334] sm:$0xf]
                  %337 = vst [vmem:[%s335] sm:$0xf] %v336
                  %v338 = vld [vmem:[%s334 + $0xc] sm:$0xf]
                  %339 = vst [vmem:[%s335 + $0x4] sm:$0xf] %v338
                $region104: #{multihead_attention_forward.3} parent=91 // loop_footer
                  %s333 = sadd.s32 1, %s329
                $region105: #{multihead_attention_forward.3} parent=91 // loop_footer_branch
                  %328 = sbr.rel target = $region101
                $region106: #{multihead_attention_forward.3} parent=91 // loop_exit
                  _
              $region92: #{multihead_attention_forward.3} parent=76 // pred_fallthru
                _
            $region77: #{multihead_attention_forward.3} parent=72 // pred_fallthru
              _
            // Predicated region
            $region78: #{multihead_attention_forward.3} parent=72 // pred_check
              _
            $region79: #{multihead_attention_forward.3} parent=72 // pred_check_branch
              %303 = sbr.rel (0) target = $region81
            $region80: #{multihead_attention_forward.3} parent=72 // pred_region
              loop: start=0, step=1, limit=1
              $region82: #{multihead_attention_forward.3} parent=80 // loop_pre_header
                _
              $region83: #{multihead_attention_forward.3} parent=80 // loop_header
                %s306 = sphi 0, %s310
                %p307 = scmp.ge.s32.totalorder %s306, 1
                %s311 = sphi %s297, %s297
                %s312 = sphi %s293, %s293
              $region84: #{multihead_attention_forward.3} parent=80 // loop_header_branch
                %309 = sbr.rel (%p307) target = $region88
              $region85: #{multihead_attention_forward.3} parent=80 // loop_body
                %v313 = vld [vmem:[%s311] sm:$0xf]
                %314 = vst [vmem:[%s312] sm:$0xf] %v313
                %v315 = vld [vmem:[%s311 + $0xc] sm:$0xf]
                %316 = vst [vmem:[%s312 + $0x4] sm:$0xf] %v315
              $region86: #{multihead_attention_forward.3} parent=80 // loop_footer
                %s310 = sadd.s32 1, %s306
              $region87: #{multihead_attention_forward.3} parent=80 // loop_footer_branch
                %305 = sbr.rel target = $region83
              $region88: #{multihead_attention_forward.3} parent=80 // loop_exit
                _
            $region81: #{multihead_attention_forward.3} parent=72 // pred_fallthru
              _
          $region73: #{multihead_attention_forward.3} parent=68 // pred_fallthru
            _
          %340 = vnop
        $region69: #{multihead_attention_forward.3} parent=23 // pred_fallthru
          _
        // Predicated region
        $region107: #{multihead_attention_forward.3} parent=23 // pred_check
          %p341 = pneg %p102
        $region108: #{multihead_attention_forward.3} parent=23 // pred_check_branch
          %343 = sbr.rel (%p341) target = $region110
        $region109: #{multihead_attention_forward.3} parent=23 // pred_region
          %s344 = sand.u32 %s92, 1
          %s345 = sand.u32 %s92, 1
          %s346 = smul.addr %s345, 8
          %s347 = scalar_lea.vmem [#allocation4], %s346
          %s348 = smul.addr %s23, 6
          %s349 = sadd.s32 2, %s348
          %s350 = smul.addr %s349, 4
          %s351 = scalar_lea.vmem %s2, %s350
          // Predicated region
          $region111: #{multihead_attention_forward.3} parent=109 // pred_check
            _
          $region112: #{multihead_attention_forward.3} parent=109 // pred_check_branch
            %353 = sbr.rel (0) target = $region114
          $region113: #{multihead_attention_forward.3} parent=109 // pred_region
            // Predicated region
            $region115: #{multihead_attention_forward.3} parent=113 // pred_check
              _
            $region116: #{multihead_attention_forward.3} parent=113 // pred_check_branch
              %355 = sbr.rel target = $region118
            $region117: #{multihead_attention_forward.3} parent=113 // pred_region
              // Predicated region
              $region130: #{multihead_attention_forward.3} parent=117 // pred_check
                _
              $region131: #{multihead_attention_forward.3} parent=117 // pred_check_branch
                %372 = sbr.rel (0) target = $region133
              $region132: #{multihead_attention_forward.3} parent=117 // pred_region
                loop: start=0, step=1, limit=1
                $region134: #{multihead_attention_forward.3} parent=132 // loop_pre_header
                  _
                $region135: #{multihead_attention_forward.3} parent=132 // loop_header
                  %s374 = sphi 0, %s378
                  %p375 = scmp.ge.s32.totalorder %s374, 1
                  %s379 = sphi %s351, %s351
                  %s380 = sphi %s347, %s347
                $region136: #{multihead_attention_forward.3} parent=132 // loop_header_branch
                  %377 = sbr.rel (%p375) target = $region140
                $region137: #{multihead_attention_forward.3} parent=132 // loop_body
                  _
                $region138: #{multihead_attention_forward.3} parent=132 // loop_footer
                  %s378 = sadd.s32 1, %s374
                $region139: #{multihead_attention_forward.3} parent=132 // loop_footer_branch
                  %373 = sbr.rel target = $region135
                $region140: #{multihead_attention_forward.3} parent=132 // loop_exit
                  _
                loop: start=0, step=1, limit=1
                $region141: #{multihead_attention_forward.3} parent=132 // loop_pre_header
                  _
                $region142: #{multihead_attention_forward.3} parent=132 // loop_header
                  %s383 = sphi 0, %s387
                  %p384 = scmp.ge.s32.totalorder %s383, 1
                  %s388 = sphi %s351, %s351
                  %s389 = sphi %s347, %s347
                $region143: #{multihead_attention_forward.3} parent=132 // loop_header_branch
                  %386 = sbr.rel (%p384) target = $region147
                $region144: #{multihead_attention_forward.3} parent=132 // loop_body
                  %v390 = vld [vmem:[%s388] sm:$0xf]
                  %391 = vst [vmem:[%s389] sm:$0xf] %v390
                  %v392 = vld [vmem:[%s388 + $0xc] sm:$0xf]
                  %393 = vst [vmem:[%s389 + $0x4] sm:$0xf] %v392
                $region145: #{multihead_attention_forward.3} parent=132 // loop_footer
                  %s387 = sadd.s32 1, %s383
                $region146: #{multihead_attention_forward.3} parent=132 // loop_footer_branch
                  %382 = sbr.rel target = $region142
                $region147: #{multihead_attention_forward.3} parent=132 // loop_exit
                  _
              $region133: #{multihead_attention_forward.3} parent=117 // pred_fallthru
                _
            $region118: #{multihead_attention_forward.3} parent=113 // pred_fallthru
              _
            // Predicated region
            $region119: #{multihead_attention_forward.3} parent=113 // pred_check
              _
            $region120: #{multihead_attention_forward.3} parent=113 // pred_check_branch
              %357 = sbr.rel (0) target = $region122
            $region121: #{multihead_attention_forward.3} parent=113 // pred_region
              loop: start=0, step=1, limit=1
              $region123: #{multihead_attention_forward.3} parent=121 // loop_pre_header
                _
              $region124: #{multihead_attention_forward.3} parent=121 // loop_header
                %s360 = sphi 0, %s364
                %p361 = scmp.ge.s32.totalorder %s360, 1
                %s365 = sphi %s351, %s351
                %s366 = sphi %s347, %s347
              $region125: #{multihead_attention_forward.3} parent=121 // loop_header_branch
                %363 = sbr.rel (%p361) target = $region129
              $region126: #{multihead_attention_forward.3} parent=121 // loop_body
                %v367 = vld [vmem:[%s365] sm:$0xf]
                %368 = vst [vmem:[%s366] sm:$0xf] %v367
                %v369 = vld [vmem:[%s365 + $0xc] sm:$0xf]
                %370 = vst [vmem:[%s366 + $0x4] sm:$0xf] %v369
              $region127: #{multihead_attention_forward.3} parent=121 // loop_footer
                %s364 = sadd.s32 1, %s360
              $region128: #{multihead_attention_forward.3} parent=121 // loop_footer_branch
                %359 = sbr.rel target = $region124
              $region129: #{multihead_attention_forward.3} parent=121 // loop_exit
                _
            $region122: #{multihead_attention_forward.3} parent=113 // pred_fallthru
              _
          $region114: #{multihead_attention_forward.3} parent=109 // pred_fallthru
            _
          %394 = vnop
        $region110: #{multihead_attention_forward.3} parent=23 // pred_fallthru
          _
      $region24: #{multihead_attention_forward.3} parent=5 // pred_fallthru
        _
      %p395 = scmp.le.s32.totalorder 1, %s16
      %p396 = scmp.lt.s32.totalorder %s16, 3
      %p397 = pnand %p395, %p396
      %p398 = pneg %p397
      // Predicated region
      $region148: #{multihead_attention_forward.3} parent=5 // pred_check
        _
      $region149: #{multihead_attention_forward.3} parent=5 // pred_check_branch
        %400 = sbr.rel (%p397) target = $region151
      $region150: #{multihead_attention_forward.3} parent=5 // pred_region
        %s401 = ssub.s32 %s16, 1
        %s402 = sand.u32 %s43, 1
        %s403 = sand.u32 %s43, 1
        %s404 = smul.addr %s403, 8
        %s405 = scalar_lea.vmem [#allocation2], %s404
        // Predicated region
        $region152: #{multihead_attention_forward.3} parent=150 // pred_check
          %p406 = pneg %p56
        $region153: #{multihead_attention_forward.3} parent=150 // pred_check_branch
          %408 = sbr.rel (%p406) target = $region155
        $region154: #{multihead_attention_forward.3} parent=150 // pred_region
          _
        $region155: #{multihead_attention_forward.3} parent=150 // pred_fallthru
          _
        %s409 = sand.u32 %s69, 1
        %s410 = sand.u32 %s69, 1
        %s411 = smul.addr %s410, 8
        %s412 = scalar_lea.vmem [#allocation3], %s411
        // Predicated region
        $region156: #{multihead_attention_forward.3} parent=150 // pred_check
          %p413 = pneg %p82
        $region157: #{multihead_attention_forward.3} parent=150 // pred_check_branch
          %415 = sbr.rel (%p413) target = $region159
        $region158: #{multihead_attention_forward.3} parent=150 // pred_region
          _
        $region159: #{multihead_attention_forward.3} parent=150 // pred_fallthru
          _
        %s416 = sand.u32 %s95, 1
        %s417 = sand.u32 %s95, 1
        %s418 = smul.addr %s417, 8
        %s419 = scalar_lea.vmem [#allocation4], %s418
        // Predicated region
        $region160: #{multihead_attention_forward.3} parent=150 // pred_check
          %p420 = pneg %p108
        $region161: #{multihead_attention_forward.3} parent=150 // pred_check_branch
          %422 = sbr.rel (%p420) target = $region163
        $region162: #{multihead_attention_forward.3} parent=150 // pred_region
          _
        $region163: #{multihead_attention_forward.3} parent=150 // pred_fallthru
          _
        %s423 = sand.u32 %s43, 1
        %s424 = sand.u32 %s43, 1
        %s425 = smul.addr %s424, 8
        %s426 = scalar_lea.vmem [#allocation2], %s425
        %p427 = pneg %p56
        %p428 = pneg %p53
        %s429 = sand.u32 %s69, 1
        %s430 = sand.u32 %s69, 1
        %s431 = smul.addr %s430, 8
        %s432 = scalar_lea.vmem [#allocation3], %s431
        %p433 = pneg %p82
        %p434 = pneg %p79
        %s435 = sand.u32 %s95, 1
        %s436 = sand.u32 %s95, 1
        %s437 = smul.addr %s436, 8
        %s438 = scalar_lea.vmem [#allocation4], %s437
        %p439 = pneg %p108
        %p440 = pneg %p105
        %p441 = pneg %p129
        %p442 = pneg %p126
        %p443 = pneg %p150
        %p444 = pneg %p147
        %p445 = pneg %p178
        %p446 = pneg %p175
        %s447 = smul.u32 2, %s26
        %p448 = scmp.lt.s32.totalorder %s25, 1
        %s449 = scalar_select %p448, %s25, 1
        %p450 = scmp.lt.s32.totalorder %s447, 1
        %s451 = scalar_select %p450, %s447, 1
        %s452 = smul.addr %s449, 2
        %s453 = sadd.s32 %s451, %s452
        %s454 = smul.addr %s453, 8
        %s455 = scalar_lea.vmem %s5, %s454
        %p456 = pneg %p206
        %p457 = pneg %p203
        %s458 = sand.u32 %s193, 1
        %s459 = scalar_lea.sflag [#allocation6], %s458
        %s460 = sand.u32 %s193, 1
        %s461 = smul.addr %s460, 16
        %s462 = scalar_lea.vmem [#allocation5], %s461
        %s463 = smul.u32 2, %s26
        %s464 = smul.u32 2, %s26
        %p465 = scmp.lt.s32.totalorder %s25, 1
        %s466 = scalar_select %p465, %s25, 1
        %p467 = scmp.lt.s32.totalorder %s464, 1
        %s468 = scalar_select %p467, %s464, 1
        %s469 = smul.addr %s466, 2
        %s470 = sadd.s32 %s468, %s469
        %s471 = smul.addr %s470, 8
        %s472 = scalar_lea.vmem %s5, %s471
        %s473 = smul.u32 2, %s26
        %s474 = smul.u32 2, %s26
        %v476 = vld [vmem:[%s405] sm:$0xf]
        %v477 = vld [vmem:[%s405 + $0x4] sm:$0xf]
        %v478 = vld [vmem:[%s412] sm:$0xf]
        %v479 = vld [vmem:[%s412 + $0x4] sm:$0xf]
        %v480 = vld [vmem:[%s419] sm:$0xf]
        %v481 = vld [vmem:[%s419 + $0x4] sm:$0xf]
        %v484 = vunpack.c.l.b16 %v476
        %v485 = vunpack.c.l.b16 %v477
        %v486 = vpack.c.b16 %v485, %v484
        %v489 = vunpack.c.l.b16 %v478
        %v490 = vunpack.c.l.b16 %v479
        %v491 = vpack.c.b16 %v490, %v489
        %vm492 = vcmask 261120
        %v494 = vsel %vm492, %v486, 0
        %v497 = vsel %vm492, %v491, 0
        %499 = vmatprep.subr.bf16.mxu0 0
        %500 = vmatpush1.bf16.xpose.msra.mxu0 %v497
        %501 = vmatprep.subr.bf16.mxu0 0
        %502 = vmatpush1.bf16.xpose.msra.mxu0 0
        %503 = vmatprep.subr.bf16.mxu0 0
        %504 = vmatpush1.bf16.xpose.msra.mxu0 0
        %505 = vmatprep.subr.bf16.mxu0 0
        %506 = vmatpush1.bf16.xpose.msra.mxu0 0
        %507 = vmatprep.subr.bf16.mxu0 0
        %508 = vmatpush1.bf16.xpose.msra.mxu0 0
        %509 = vmatprep.subr.bf16.mxu0 0
        %510 = vmatpush1.bf16.xpose.msra.mxu0 0
        %511 = vmatprep.subr.bf16.mxu0 0
        %512 = vmatpush1.bf16.xpose.msra.mxu0 0
        %513 = vmatprep.subr.bf16.mxu0 0
        %514 = vmatpush1.bf16.xpose.msra.mxu0 0
        %515 = vmatprep.subr.bf16.mxu0 0
        %516 = vmatpush1.bf16.xpose.msra.mxu0 0
        %517 = vmatprep.subr.bf16.mxu0 0
        %518 = vmatpush1.bf16.xpose.msra.mxu0 0
        %519 = vmatprep.subr.bf16.mxu0 0
        %520 = vmatpush1.bf16.xpose.msra.mxu0 0
        %521 = vmatprep.subr.bf16.mxu0 0
        %522 = vmatpush1.bf16.xpose.msra.mxu0 0
        %523 = vmatprep.subr.bf16.mxu0 0
        %524 = vmatpush1.bf16.xpose.msra.mxu0 0
        %525 = vmatprep.subr.bf16.mxu0 0
        %526 = vmatpush1.bf16.xpose.msra.mxu0 0
        %527 = vmatprep.subr.bf16.mxu0 0
        %528 = vmatpush1.bf16.xpose.msra.mxu0 0
        %529 = vmatprep.subr.bf16.mxu0 0
        %530 = vmatpush1.bf16.xpose.msra.mxu0 0
        %531 = vmatprep.mubr.bf16.mxu0 0
        %532 = vmatmul.mubr.bf16.gmra.mrb[0].mxu0 %v494
        %v533 = vpop.f32.mrb[0].mxu0
        %v534 = vadd.f32 0.0, %v533
        %v535 = vpop.f32.mrb[0].mxu0
        %v536 = vpop.f32.mrb[0].mxu0
        %v537 = vadd.f32 0.0, %v536
        %v538 = vpop.f32.mrb[0].mxu0
        %539 = vdwg.mxu0
        %vm540 = vcmask 130048
        %v541 = vsel %vm540, %v534, -inf
        %542 = vmax.xlane.f32.xlu0 %v541
        %v543 = vpop.xlane.xlu0 %542
        %v544 = vsel %vm540, %v537, -inf
        %545 = vmax.xlane.f32.xlu0 %v544
        %v546 = vpop.xlane.xlu0 %545
        %v547 = vsub.f32 %v534, %v543
        %v548 = vsub.f32 %v537, %v546
        %v549 = vmul.f32 %v547, 1.442695
        %v550 = vpow.pop %v549
        %v551 = vmul.f32 %v548, 1.442695
        %v552 = vpow.pop %v551
        %v553 = vsel %vm540, %v550, 0.0
        %554 = vadd.xlane.f32.xlu0 %v553
        %v555 = vpop.xlane.xlu0 %554
        %v556 = vsel %vm540, %v552, 0.0
        %557 = vadd.xlane.f32.xlu0 %v556
        %v558 = vpop.xlane.xlu0 %557
        %v559 = vrcp.pop %v555
        %v560 = vmul.f32 1.0, %v559
        %v561 = vrcp.pop %v558
        %v562 = vmul.f32 1.0, %v561
        %v563 = vmul.f32 %v550, %v560
        %v564 = vmul.f32 %v552, %v562
        %v565 = vpack.c.bf16 %v564, %v563
        %v568 = vunpack.c.l.b16 %v480
        %v569 = vunpack.c.l.b16 %v481
        %v570 = vpack.c.b16 %v569, %v568
        %v573 = vsel %vm540, %v565, 0
        %575 = vmatprep.subr.bf16.mxu0 0
        %576 = vmatpush1.bf16.msra.mxu0 %v570
        %577 = vmatprep.subr.bf16.mxu0 0
        %578 = vmatpush1.bf16.msra.mxu0 0
        %579 = vmatprep.subr.bf16.mxu0 0
        %580 = vmatpush1.bf16.msra.mxu0 0
        %581 = vmatprep.subr.bf16.mxu0 0
        %582 = vmatpush1.bf16.msra.mxu0 0
        %583 = vmatprep.subr.bf16.mxu0 0
        %584 = vmatpush1.bf16.msra.mxu0 0
        %585 = vmatprep.subr.bf16.mxu0 0
        %586 = vmatpush1.bf16.msra.mxu0 0
        %587 = vmatprep.subr.bf16.mxu0 0
        %588 = vmatpush1.bf16.msra.mxu0 0
        %589 = vmatprep.subr.bf16.mxu0 0
        %590 = vmatpush1.bf16.msra.mxu0 0
        %591 = vmatprep.subr.bf16.mxu0 0
        %592 = vmatpush1.bf16.msra.mxu0 0
        %593 = vmatprep.subr.bf16.mxu0 0
        %594 = vmatpush1.bf16.msra.mxu0 0
        %595 = vmatprep.subr.bf16.mxu0 0
        %596 = vmatpush1.bf16.msra.mxu0 0
        %597 = vmatprep.subr.bf16.mxu0 0
        %598 = vmatpush1.bf16.msra.mxu0 0
        %599 = vmatprep.subr.bf16.mxu0 0
        %600 = vmatpush1.bf16.msra.mxu0 0
        %601 = vmatprep.subr.bf16.mxu0 0
        %602 = vmatpush1.bf16.msra.mxu0 0
        %603 = vmatprep.subr.bf16.mxu0 0
        %604 = vmatpush1.bf16.msra.mxu0 0
        %605 = vmatprep.subr.bf16.mxu0 0
        %606 = vmatpush1.bf16.msra.mxu0 0
        %607 = vmatprep.mubr.bf16.mxu0 0
        %608 = vmatmul.mubr.bf16.gmra.mrb[0].mxu0 %v573
        %v609 = vpop.f32.mrb[0].mxu0
        %v610 = vadd.f32 0.0, %v609
        %v611 = vpop.f32.mrb[0].mxu0
        %v612 = vpop.f32.mrb[0].mxu0
        %v613 = vadd.f32 0.0, %v612
        %v614 = vpop.f32.mrb[0].mxu0
        %615 = vdwg.mxu0
        %v616 = vpack.c.bf16 %v613, %v610
        %v617 = vld [vmem:[%s3] sm:$0xf]
        %v618 = vld [vmem:[%s3 + $0x4] sm:$0xf]
        %v619 = vld [vmem:[%s3 + $0x8] sm:$0xf]
        %v620 = vld [vmem:[%s3 + $0xc] sm:$0xf]
        %621 = vrot.lane.b32.xlu0 %v486, 96
        %v622 = vpop.permute.xlu0 %621
        %623 = vrot.lane.b32.xlu0 %v491, 96
        %v624 = vpop.permute.xlu0 %623
        %v626 = vsel %vm492, %v622, 0
        %v629 = vsel %vm492, %v624, 0
        %631 = vmatprep.subr.bf16.mxu0 0
        %632 = vmatpush1.bf16.xpose.msra.mxu0 %v629
        %633 = vmatprep.subr.bf16.mxu0 0
        %634 = vmatpush1.bf16.xpose.msra.mxu0 0
        %635 = vmatprep.subr.bf16.mxu0 0
        %636 = vmatpush1.bf16.xpose.msra.mxu0 0
        %637 = vmatprep.subr.bf16.mxu0 0
        %638 = vmatpush1.bf16.xpose.msra.mxu0 0
        %639 = vmatprep.subr.bf16.mxu0 0
        %640 = vmatpush1.bf16.xpose.msra.mxu0 0
        %641 = vmatprep.subr.bf16.mxu0 0
        %642 = vmatpush1.bf16.xpose.msra.mxu0 0
        %643 = vmatprep.subr.bf16.mxu0 0
        %644 = vmatpush1.bf16.xpose.msra.mxu0 0
        %645 = vmatprep.subr.bf16.mxu0 0
        %646 = vmatpush1.bf16.xpose.msra.mxu0 0
        %647 = vmatprep.subr.bf16.mxu0 0
        %648 = vmatpush1.bf16.xpose.msra.mxu0 0
        %649 = vmatprep.subr.bf16.mxu0 0
        %650 = vmatpush1.bf16.xpose.msra.mxu0 0
        %651 = vmatprep.subr.bf16.mxu0 0
        %652 = vmatpush1.bf16.xpose.msra.mxu0 0
        %653 = vmatprep.subr.bf16.mxu0 0
        %654 = vmatpush1.bf16.xpose.msra.mxu0 0
        %655 = vmatprep.subr.bf16.mxu0 0
        %656 = vmatpush1.bf16.xpose.msra.mxu0 0
        %657 = vmatprep.subr.bf16.mxu0 0
        %658 = vmatpush1.bf16.xpose.msra.mxu0 0
        %659 = vmatprep.subr.bf16.mxu0 0
        %660 = vmatpush1.bf16.xpose.msra.mxu0 0
        %661 = vmatprep.subr.bf16.mxu0 0
        %662 = vmatpush1.bf16.xpose.msra.mxu0 0
        %663 = vmatprep.mubr.bf16.mxu0 0
        %664 = vmatmul.mubr.bf16.gmra.mrb[0].mxu0 %v626
        %v665 = vpop.f32.mrb[0].mxu0
        %v666 = vadd.f32 0.0, %v665
        %v667 = vpop.f32.mrb[0].mxu0
        %v668 = vpop.f32.mrb[0].mxu0
        %v669 = vadd.f32 0.0, %v668
        %v670 = vpop.f32.mrb[0].mxu0
        %671 = vdwg.mxu0
        %v672 = vsel %vm540, %v666, -inf
        %673 = vmax.xlane.f32.xlu0 %v672
        %v674 = vpop.xlane.xlu0 %673
        %v675 = vsel %vm540, %v669, -inf
        %676 = vmax.xlane.f32.xlu0 %v675
        %v677 = vpop.xlane.xlu0 %676
        %v678 = vsub.f32 %v666, %v674
        %v679 = vsub.f32 %v669, %v677
        %v680 = vmul.f32 %v678, 1.442695
        %v681 = vpow.pop %v680
        %v682 = vmul.f32 %v679, 1.442695
        %v683 = vpow.pop %v682
        %v684 = vsel %vm540, %v681, 0.0
        %685 = vadd.xlane.f32.xlu0 %v684
        %v686 = vpop.xlane.xlu0 %685
        %v687 = vsel %vm540, %v683, 0.0
        %688 = vadd.xlane.f32.xlu0 %v687
        %v689 = vpop.xlane.xlu0 %688
        %v690 = vrcp.pop %v686
        %v691 = vmul.f32 1.0, %v690
        %v692 = vrcp.pop %v689
        %v693 = vmul.f32 1.0, %v692
        %v694 = vmul.f32 %v681, %v691
        %v695 = vmul.f32 %v683, %v693
        %v696 = vadd.f32 %v563, %v694
        %v697 = vadd.f32 %v564, %v695
        %v698 = vpack.c.bf16 %v695, %v694
        %699 = vrot.lane.b32.xlu0 %v570, 96
        %v700 = vpop.permute.xlu0 %699
        %v703 = vsel %vm540, %v698, 0
        %705 = vmatprep.subr.bf16.mxu0 0
        %706 = vmatpush1.bf16.msra.mxu0 %v700
        %707 = vmatprep.subr.bf16.mxu0 0
        %708 = vmatpush1.bf16.msra.mxu0 0
        %709 = vmatprep.subr.bf16.mxu0 0
        %710 = vmatpush1.bf16.msra.mxu0 0
        %711 = vmatprep.subr.bf16.mxu0 0
        %712 = vmatpush1.bf16.msra.mxu0 0
        %713 = vmatprep.subr.bf16.mxu0 0
        %714 = vmatpush1.bf16.msra.mxu0 0
        %715 = vmatprep.subr.bf16.mxu0 0
        %716 = vmatpush1.bf16.msra.mxu0 0
        %717 = vmatprep.subr.bf16.mxu0 0
        %718 = vmatpush1.bf16.msra.mxu0 0
        %719 = vmatprep.subr.bf16.mxu0 0
        %720 = vmatpush1.bf16.msra.mxu0 0
        %721 = vmatprep.subr.bf16.mxu0 0
        %722 = vmatpush1.bf16.msra.mxu0 0
        %723 = vmatprep.subr.bf16.mxu0 0
        %724 = vmatpush1.bf16.msra.mxu0 0
        %725 = vmatprep.subr.bf16.mxu0 0
        %726 = vmatpush1.bf16.msra.mxu0 0
        %727 = vmatprep.subr.bf16.mxu0 0
        %728 = vmatpush1.bf16.msra.mxu0 0
        %729 = vmatprep.subr.bf16.mxu0 0
        %730 = vmatpush1.bf16.msra.mxu0 0
        %731 = vmatprep.subr.bf16.mxu0 0
        %732 = vmatpush1.bf16.msra.mxu0 0
        %733 = vmatprep.subr.bf16.mxu0 0
        %734 = vmatpush1.bf16.msra.mxu0 0
        %735 = vmatprep.subr.bf16.mxu0 0
        %736 = vmatpush1.bf16.msra.mxu0 0
        %737 = vmatprep.mubr.bf16.mxu0 0
        %738 = vmatmul.mubr.bf16.gmra.mrb[0].mxu0 %v703
        %v739 = vpop.f32.mrb[0].mxu0
        %v740 = vadd.f32 0.0, %v739
        %v741 = vpop.f32.mrb[0].mxu0
        %v742 = vpop.f32.mrb[0].mxu0
        %v743 = vadd.f32 0.0, %v742
        %v744 = vpop.f32.mrb[0].mxu0
        %745 = vdwg.mxu0
        %v746 = vpack.c.bf16 %v743, %v740
        %v747 = vld [vmem:[%s3 + $0x10] sm:$0xf]
        %v748 = vld [vmem:[%s3 + $0x14] sm:$0xf]
        %v749 = vld [vmem:[%s3 + $0x18] sm:$0xf]
        %v750 = vld [vmem:[%s3 + $0x1c] sm:$0xf]
        %v755 = vunpack.c.l.b16 %v747
        %v756 = vunpack.c.l.b16 %v748
        %v757 = vunpack.c.l.b16 %v749
        %v758 = vunpack.c.l.b16 %v750
        %v759 = vpack.c.b16 %v756, %v755
        %v760 = vpack.c.b16 %v758, %v757
        %v764 = vsel %vm492, %v746, 0
        %766 = vmatprep.subr.bf16.mxu0 0
        %767 = vmatpush1.bf16.msra.mxu0 %v759
        %768 = vmatprep.subr.bf16.mxu0 0
        %769 = vmatpush1.bf16.msra.mxu0 %v760
        %770 = vmatprep.subr.bf16.mxu0 0
        %771 = vmatpush1.bf16.msra.mxu0 0
        %772 = vmatprep.subr.bf16.mxu0 0
        %773 = vmatpush1.bf16.msra.mxu0 0
        %774 = vmatprep.subr.bf16.mxu0 0
        %775 = vmatpush1.bf16.msra.mxu0 0
        %776 = vmatprep.subr.bf16.mxu0 0
        %777 = vmatpush1.bf16.msra.mxu0 0
        %778 = vmatprep.subr.bf16.mxu0 0
        %779 = vmatpush1.bf16.msra.mxu0 0
        %780 = vmatprep.subr.bf16.mxu0 0
        %781 = vmatpush1.bf16.msra.mxu0 0
        %782 = vmatprep.subr.bf16.mxu0 0
        %783 = vmatpush1.bf16.msra.mxu0 0
        %784 = vmatprep.subr.bf16.mxu0 0
        %785 = vmatpush1.bf16.msra.mxu0 0
        %786 = vmatprep.subr.bf16.mxu0 0
        %787 = vmatpush1.bf16.msra.mxu0 0
        %788 = vmatprep.subr.bf16.mxu0 0
        %789 = vmatpush1.bf16.msra.mxu0 0
        %790 = vmatprep.subr.bf16.mxu0 0
        %791 = vmatpush1.bf16.msra.mxu0 0
        %792 = vmatprep.subr.bf16.mxu0 0
        %793 = vmatpush1.bf16.msra.mxu0 0
        %794 = vmatprep.subr.bf16.mxu0 0
        %795 = vmatpush1.bf16.msra.mxu0 0
        %796 = vmatprep.subr.bf16.mxu0 0
        %797 = vmatpush1.bf16.msra.mxu0 0
        %798 = vmatprep.mubr.bf16.mxu0 0
        %799 = vmatmul.mubr.bf16.gmra.mrb[0].mxu0 %v764
        %v800 = vpop.f32.mrb[0].mxu0
        %v801 = vadd.f32 0.0, %v800
        %v802 = vpop.f32.mrb[0].mxu0
        %v803 = vpop.f32.mrb[0].mxu0
        %v804 = vadd.f32 0.0, %v803
        %v805 = vpop.f32.mrb[0].mxu0
        %806 = vdwg.mxu0
        %v811 = vunpack.c.l.b16 %v617
        %v812 = vunpack.c.l.b16 %v618
        %v813 = vunpack.c.l.b16 %v619
        %v814 = vunpack.c.l.b16 %v620
        %v815 = vpack.c.b16 %v812, %v811
        %v816 = vpack.c.b16 %v814, %v813
        %v820 = vsel %vm492, %v616, 0
        %822 = vmatprep.subr.bf16.mxu0 0
        %823 = vmatpush1.bf16.msra.mxu0 %v815
        %824 = vmatprep.subr.bf16.mxu0 0
        %825 = vmatpush1.bf16.msra.mxu0 %v816
        %826 = vmatprep.subr.bf16.mxu0 0
        %827 = vmatpush1.bf16.msra.mxu0 0
        %828 = vmatprep.subr.bf16.mxu0 0
        %829 = vmatpush1.bf16.msra.mxu0 0
        %830 = vmatprep.subr.bf16.mxu0 0
        %831 = vmatpush1.bf16.msra.mxu0 0
        %832 = vmatprep.subr.bf16.mxu0 0
        %833 = vmatpush1.bf16.msra.mxu0 0
        %834 = vmatprep.subr.bf16.mxu0 0
        %835 = vmatpush1.bf16.msra.mxu0 0
        %836 = vmatprep.subr.bf16.mxu0 0
        %837 = vmatpush1.bf16.msra.mxu0 0
        %838 = vmatprep.subr.bf16.mxu0 0
        %839 = vmatpush1.bf16.msra.mxu0 0
        %840 = vmatprep.subr.bf16.mxu0 0
        %841 = vmatpush1.bf16.msra.mxu0 0
        %842 = vmatprep.subr.bf16.mxu0 0
        %843 = vmatpush1.bf16.msra.mxu0 0
        %844 = vmatprep.subr.bf16.mxu0 0
        %845 = vmatpush1.bf16.msra.mxu0 0
        %846 = vmatprep.subr.bf16.mxu0 0
        %847 = vmatpush1.bf16.msra.mxu0 0
        %848 = vmatprep.subr.bf16.mxu0 0
        %849 = vmatpush1.bf16.msra.mxu0 0
        %850 = vmatprep.subr.bf16.mxu0 0
        %851 = vmatpush1.bf16.msra.mxu0 0
        %852 = vmatprep.subr.bf16.mxu0 0
        %853 = vmatpush1.bf16.msra.mxu0 0
        %854 = vmatprep.mubr.bf16.mxu0 0
        %855 = vmatmul.mubr.bf16.gmra.mrb[0].mxu0 %v820
        %v856 = vpop.f32.mrb[0].mxu0
        %v857 = vadd.f32 %v801, %v856
        %v858 = vpop.f32.mrb[0].mxu0
        %v859 = vpop.f32.mrb[0].mxu0
        %v860 = vadd.f32 %v804, %v859
        %v861 = vpop.f32.mrb[0].mxu0
        %862 = vdwg.mxu0
        %863 = vrot.lane.b32.xlu0 %v486, 64
        %v864 = vpop.permute.xlu0 %863
        %865 = vrot.lane.b32.xlu0 %v491, 64
        %v866 = vpop.permute.xlu0 %865
        %v868 = vsel %vm492, %v864, 0
        %v871 = vsel %vm492, %v866, 0
        %873 = vmatprep.subr.bf16.mxu0 0
        %874 = vmatpush1.bf16.xpose.msra.mxu0 %v871
        %875 = vmatprep.subr.bf16.mxu0 0
        %876 = vmatpush1.bf16.xpose.msra.mxu0 0
        %877 = vmatprep.subr.bf16.mxu0 0
        %878 = vmatpush1.bf16.xpose.msra.mxu0 0
        %879 = vmatprep.subr.bf16.mxu0 0
        %880 = vmatpush1.bf16.xpose.msra.mxu0 0
        %881 = vmatprep.subr.bf16.mxu0 0
        %882 = vmatpush1.bf16.xpose.msra.mxu0 0
        %883 = vmatprep.subr.bf16.mxu0 0
        %884 = vmatpush1.bf16.xpose.msra.mxu0 0
        %885 = vmatprep.subr.bf16.mxu0 0
        %886 = vmatpush1.bf16.xpose.msra.mxu0 0
        %887 = vmatprep.subr.bf16.mxu0 0
        %888 = vmatpush1.bf16.xpose.msra.mxu0 0
        %889 = vmatprep.subr.bf16.mxu0 0
        %890 = vmatpush1.bf16.xpose.msra.mxu0 0
        %891 = vmatprep.subr.bf16.mxu0 0
        %892 = vmatpush1.bf16.xpose.msra.mxu0 0
        %893 = vmatprep.subr.bf16.mxu0 0
        %894 = vmatpush1.bf16.xpose.msra.mxu0 0
        %895 = vmatprep.subr.bf16.mxu0 0
        %896 = vmatpush1.bf16.xpose.msra.mxu0 0
        %897 = vmatprep.subr.bf16.mxu0 0
        %898 = vmatpush1.bf16.xpose.msra.mxu0 0
        %899 = vmatprep.subr.bf16.mxu0 0
        %900 = vmatpush1.bf16.xpose.msra.mxu0 0
        %901 = vmatprep.subr.bf16.mxu0 0
        %902 = vmatpush1.bf16.xpose.msra.mxu0 0
        %903 = vmatprep.subr.bf16.mxu0 0
        %904 = vmatpush1.bf16.xpose.msra.mxu0 0
        %905 = vmatprep.mubr.bf16.mxu0 0
        %906 = vmatmul.mubr.bf16.gmra.mrb[0].mxu0 %v868
        %v907 = vpop.f32.mrb[0].mxu0
        %v908 = vadd.f32 0.0, %v907
        %v909 = vpop.f32.mrb[0].mxu0
        %v910 = vpop.f32.mrb[0].mxu0
        %v911 = vadd.f32 0.0, %v910
        %v912 = vpop.f32.mrb[0].mxu0
        %913 = vdwg.mxu0
        %v914 = vsel %vm540, %v908, -inf
        %915 = vmax.xlane.f32.xlu0 %v914
        %v916 = vpop.xlane.xlu0 %915
        %v917 = vsel %vm540, %v911, -inf
        %918 = vmax.xlane.f32.xlu0 %v917
        %v919 = vpop.xlane.xlu0 %918
        %v920 = vsub.f32 %v908, %v916
        %v921 = vsub.f32 %v911, %v919
        %v922 = vmul.f32 %v920, 1.442695
        %v923 = vpow.pop %v922
        %v924 = vmul.f32 %v921, 1.442695
        %v925 = vpow.pop %v924
        %v926 = vsel %vm540, %v923, 0.0
        %927 = vadd.xlane.f32.xlu0 %v926
        %v928 = vpop.xlane.xlu0 %927
        %v929 = vsel %vm540, %v925, 0.0
        %930 = vadd.xlane.f32.xlu0 %v929
        %v931 = vpop.xlane.xlu0 %930
        %v932 = vrcp.pop %v928
        %v933 = vmul.f32 1.0, %v932
        %v934 = vrcp.pop %v931
        %v935 = vmul.f32 1.0, %v934
        %v936 = vmul.f32 %v923, %v933
        %v937 = vmul.f32 %v925, %v935
        %v938 = vadd.f32 %v696, %v936
        %v939 = vadd.f32 %v697, %v937
        %v940 = vpack.c.bf16 %v937, %v936
        %941 = vrot.lane.b32.xlu0 %v570, 64
        %v942 = vpop.permute.xlu0 %941
        %v945 = vsel %vm540, %v940, 0
        %947 = vmatprep.subr.bf16.mxu0 0
        %948 = vmatpush1.bf16.msra.mxu0 %v942
        %949 = vmatprep.subr.bf16.mxu0 0
        %950 = vmatpush1.bf16.msra.mxu0 0
        %951 = vmatprep.subr.bf16.mxu0 0
        %952 = vmatpush1.bf16.msra.mxu0 0
        %953 = vmatprep.subr.bf16.mxu0 0
        %954 = vmatpush1.bf16.msra.mxu0 0
        %955 = vmatprep.subr.bf16.mxu0 0
        %956 = vmatpush1.bf16.msra.mxu0 0
        %957 = vmatprep.subr.bf16.mxu0 0
        %958 = vmatpush1.bf16.msra.mxu0 0
        %959 = vmatprep.subr.bf16.mxu0 0
        %960 = vmatpush1.bf16.msra.mxu0 0
        %961 = vmatprep.subr.bf16.mxu0 0
        %962 = vmatpush1.bf16.msra.mxu0 0
        %963 = vmatprep.subr.bf16.mxu0 0
        %964 = vmatpush1.bf16.msra.mxu0 0
        %965 = vmatprep.subr.bf16.mxu0 0
        %966 = vmatpush1.bf16.msra.mxu0 0
        %967 = vmatprep.subr.bf16.mxu0 0
        %968 = vmatpush1.bf16.msra.mxu0 0
        %969 = vmatprep.subr.bf16.mxu0 0
        %970 = vmatpush1.bf16.msra.mxu0 0
        %971 = vmatprep.subr.bf16.mxu0 0
        %972 = vmatpush1.bf16.msra.mxu0 0
        %973 = vmatprep.subr.bf16.mxu0 0
        %974 = vmatpush1.bf16.msra.mxu0 0
        %975 = vmatprep.subr.bf16.mxu0 0
        %976 = vmatpush1.bf16.msra.mxu0 0
        %977 = vmatprep.subr.bf16.mxu0 0
        %978 = vmatpush1.bf16.msra.mxu0 0
        %979 = vmatprep.mubr.bf16.mxu0 0
        %980 = vmatmul.mubr.bf16.gmra.mrb[0].mxu0 %v945
        %v981 = vpop.f32.mrb[0].mxu0
        %v982 = vadd.f32 0.0, %v981
        %v983 = vpop.f32.mrb[0].mxu0
        %v984 = vpop.f32.mrb[0].mxu0
        %v985 = vadd.f32 0.0, %v984
        %v986 = vpop.f32.mrb[0].mxu0
        %987 = vdwg.mxu0
        %v988 = vpack.c.bf16 %v985, %v982
        %v989 = vld [vmem:[%s3 + $0x20] sm:$0xf]
        %v990 = vld [vmem:[%s3 + $0x24] sm:$0xf]
        %v991 = vld [vmem:[%s3 + $0x28] sm:$0xf]
        %v992 = vld [vmem:[%s3 + $0x2c] sm:$0xf]
        %v997 = vunpack.c.l.b16 %v989
        %v998 = vunpack.c.l.b16 %v990
        %v999 = vunpack.c.l.b16 %v991
        %v1000 = vunpack.c.l.b16 %v992
        %v1001 = vpack.c.b16 %v998, %v997
        %v1002 = vpack.c.b16 %v1000, %v999
        %v1006 = vsel %vm492, %v988, 0
        %1008 = vmatprep.subr.bf16.mxu0 0
        %1009 = vmatpush1.bf16.msra.mxu0 %v1001
        %1010 = vmatprep.subr.bf16.mxu0 0
        %1011 = vmatpush1.bf16.msra.mxu0 %v1002
        %1012 = vmatprep.subr.bf16.mxu0 0
        %1013 = vmatpush1.bf16.msra.mxu0 0
        %1014 = vmatprep.subr.bf16.mxu0 0
        %1015 = vmatpush1.bf16.msra.mxu0 0
        %1016 = vmatprep.subr.bf16.mxu0 0
        %1017 = vmatpush1.bf16.msra.mxu0 0
        %1018 = vmatprep.subr.bf16.mxu0 0
        %1019 = vmatpush1.bf16.msra.mxu0 0
        %1020 = vmatprep.subr.bf16.mxu0 0
        %1021 = vmatpush1.bf16.msra.mxu0 0
        %1022 = vmatprep.subr.bf16.mxu0 0
        %1023 = vmatpush1.bf16.msra.mxu0 0
        %1024 = vmatprep.subr.bf16.mxu0 0
        %1025 = vmatpush1.bf16.msra.mxu0 0
        %1026 = vmatprep.subr.bf16.mxu0 0
        %1027 = vmatpush1.bf16.msra.mxu0 0
        %1028 = vmatprep.subr.bf16.mxu0 0
        %1029 = vmatpush1.bf16.msra.mxu0 0
        %1030 = vmatprep.subr.bf16.mxu0 0
        %1031 = vmatpush1.bf16.msra.mxu0 0
        %1032 = vmatprep.subr.bf16.mxu0 0
        %1033 = vmatpush1.bf16.msra.mxu0 0
        %1034 = vmatprep.subr.bf16.mxu0 0
        %1035 = vmatpush1.bf16.msra.mxu0 0
        %1036 = vmatprep.subr.bf16.mxu0 0
        %1037 = vmatpush1.bf16.msra.mxu0 0
        %1038 = vmatprep.subr.bf16.mxu0 0
        %1039 = vmatpush1.bf16.msra.mxu0 0
        %1040 = vmatprep.mubr.bf16.mxu0 0
        %1041 = vmatmul.mubr.bf16.gmra.mrb[0].mxu0 %v1006
        %v1042 = vpop.f32.mrb[0].mxu0
        %v1043 = vadd.f32 0.0, %v1042
        %v1044 = vpop.f32.mrb[0].mxu0
        %v1045 = vpop.f32.mrb[0].mxu0
        %v1046 = vadd.f32 0.0, %v1045
        %v1047 = vpop.f32.mrb[0].mxu0
        %1048 = vdwg.mxu0
        %v1049 = vadd.f32 %v857, %v1043
        %v1050 = vadd.f32 %v860, %v1046
        %1051 = vrot.lane.b32.xlu0 %v486, 32
        %v1052 = vpop.permute.xlu0 %1051
        %1053 = vrot.lane.b32.xlu0 %v491, 32
        %v1054 = vpop.permute.xlu0 %1053
        %v1056 = vsel %vm492, %v1052, 0
        %v1059 = vsel %vm492, %v1054, 0
        %1061 = vmatprep.subr.bf16.mxu0 0
        %1062 = vmatpush1.bf16.xpose.msra.mxu0 %v1059
        %1063 = vmatprep.subr.bf16.mxu0 0
        %1064 = vmatpush1.bf16.xpose.msra.mxu0 0
        %1065 = vmatprep.subr.bf16.mxu0 0
        %1066 = vmatpush1.bf16.xpose.msra.mxu0 0
        %1067 = vmatprep.subr.bf16.mxu0 0
        %1068 = vmatpush1.bf16.xpose.msra.mxu0 0
        %1069 = vmatprep.subr.bf16.mxu0 0
        %1070 = vmatpush1.bf16.xpose.msra.mxu0 0
        %1071 = vmatprep.subr.bf16.mxu0 0
        %1072 = vmatpush1.bf16.xpose.msra.mxu0 0
        %1073 = vmatprep.subr.bf16.mxu0 0
        %1074 = vmatpush1.bf16.xpose.msra.mxu0 0
        %1075 = vmatprep.subr.bf16.mxu0 0
        %1076 = vmatpush1.bf16.xpose.msra.mxu0 0
        %1077 = vmatprep.subr.bf16.mxu0 0
        %1078 = vmatpush1.bf16.xpose.msra.mxu0 0
        %1079 = vmatprep.subr.bf16.mxu0 0
        %1080 = vmatpush1.bf16.xpose.msra.mxu0 0
        %1081 = vmatprep.subr.bf16.mxu0 0
        %1082 = vmatpush1.bf16.xpose.msra.mxu0 0
        %1083 = vmatprep.subr.bf16.mxu0 0
        %1084 = vmatpush1.bf16.xpose.msra.mxu0 0
        %1085 = vmatprep.subr.bf16.mxu0 0
        %1086 = vmatpush1.bf16.xpose.msra.mxu0 0
        %1087 = vmatprep.subr.bf16.mxu0 0
        %1088 = vmatpush1.bf16.xpose.msra.mxu0 0
        %1089 = vmatprep.subr.bf16.mxu0 0
        %1090 = vmatpush1.bf16.xpose.msra.mxu0 0
        %1091 = vmatprep.subr.bf16.mxu0 0
        %1092 = vmatpush1.bf16.xpose.msra.mxu0 0
        %1093 = vmatprep.mubr.bf16.mxu0 0
        %1094 = vmatmul.mubr.bf16.gmra.mrb[0].mxu0 %v1056
        %v1095 = vpop.f32.mrb[0].mxu0
        %v1096 = vadd.f32 0.0, %v1095
        %v1097 = vpop.f32.mrb[0].mxu0
        %v1098 = vpop.f32.mrb[0].mxu0
        %v1099 = vadd.f32 0.0, %v1098
        %v1100 = vpop.f32.mrb[0].mxu0
        %1101 = vdwg.mxu0
        %v1102 = vsel %vm540, %v1096, -inf
        %1103 = vmax.xlane.f32.xlu0 %v1102
        %v1104 = vpop.xlane.xlu0 %1103
        %v1105 = vsel %vm540, %v1099, -inf
        %1106 = vmax.xlane.f32.xlu0 %v1105
        %v1107 = vpop.xlane.xlu0 %1106
        %v1108 = vsub.f32 %v1096, %v1104
        %v1109 = vsub.f32 %v1099, %v1107
        %v1110 = vmul.f32 %v1108, 1.442695
        %v1111 = vpow.pop %v1110
        %v1112 = vmul.f32 %v1109, 1.442695
        %v1113 = vpow.pop %v1112
        %v1114 = vsel %vm540, %v1111, 0.0
        %1115 = vadd.xlane.f32.xlu0 %v1114
        %v1116 = vpop.xlane.xlu0 %1115
        %v1117 = vsel %vm540, %v1113, 0.0
        %1118 = vadd.xlane.f32.xlu0 %v1117
        %v1119 = vpop.xlane.xlu0 %1118
        %v1120 = vrcp.pop %v1116
        %v1121 = vmul.f32 1.0, %v1120
        %v1122 = vrcp.pop %v1119
        %v1123 = vmul.f32 1.0, %v1122
        %v1124 = vmul.f32 %v1111, %v1121
        %v1125 = vmul.f32 %v1113, %v1123
        %v1126 = vadd.f32 %v938, %v1124
        %v1127 = vadd.f32 %v939, %v1125
        %v1128 = vpack.c.bf16 %v1125, %v1124
        %1129 = vrot.lane.b32.xlu0 %v570, 32
        %v1130 = vpop.permute.xlu0 %1129
        %v1133 = vsel %vm540, %v1128, 0
        %1135 = vmatprep.subr.bf16.mxu0 0
        %1136 = vmatpush1.bf16.msra.mxu0 %v1130
        %1137 = vmatprep.subr.bf16.mxu0 0
        %1138 = vmatpush1.bf16.msra.mxu0 0
        %1139 = vmatprep.subr.bf16.mxu0 0
        %1140 = vmatpush1.bf16.msra.mxu0 0
        %1141 = vmatprep.subr.bf16.mxu0 0
        %1142 = vmatpush1.bf16.msra.mxu0 0
        %1143 = vmatprep.subr.bf16.mxu0 0
        %1144 = vmatpush1.bf16.msra.mxu0 0
        %1145 = vmatprep.subr.bf16.mxu0 0
        %1146 = vmatpush1.bf16.msra.mxu0 0
        %1147 = vmatprep.subr.bf16.mxu0 0
        %1148 = vmatpush1.bf16.msra.mxu0 0
        %1149 = vmatprep.subr.bf16.mxu0 0
        %1150 = vmatpush1.bf16.msra.mxu0 0
        %1151 = vmatprep.subr.bf16.mxu0 0
        %1152 = vmatpush1.bf16.msra.mxu0 0
        %1153 = vmatprep.subr.bf16.mxu0 0
        %1154 = vmatpush1.bf16.msra.mxu0 0
        %1155 = vmatprep.subr.bf16.mxu0 0
        %1156 = vmatpush1.bf16.msra.mxu0 0
        %1157 = vmatprep.subr.bf16.mxu0 0
        %1158 = vmatpush1.bf16.msra.mxu0 0
        %1159 = vmatprep.subr.bf16.mxu0 0
        %1160 = vmatpush1.bf16.msra.mxu0 0
        %1161 = vmatprep.subr.bf16.mxu0 0
        %1162 = vmatpush1.bf16.msra.mxu0 0
        %1163 = vmatprep.subr.bf16.mxu0 0
        %1164 = vmatpush1.bf16.msra.mxu0 0
        %1165 = vmatprep.subr.bf16.mxu0 0
        %1166 = vmatpush1.bf16.msra.mxu0 0
        %1167 = vmatprep.mubr.bf16.mxu0 0
        %1168 = vmatmul.mubr.bf16.gmra.mrb[0].mxu0 %v1133
        %v1169 = vpop.f32.mrb[0].mxu0
        %v1170 = vadd.f32 0.0, %v1169
        %v1171 = vpop.f32.mrb[0].mxu0
        %v1172 = vpop.f32.mrb[0].mxu0
        %v1173 = vadd.f32 0.0, %v1172
        %v1174 = vpop.f32.mrb[0].mxu0
        %1175 = vdwg.mxu0
        %v1176 = vpack.c.bf16 %v1173, %v1170
        %v1177 = vld [vmem:[%s3 + $0x30] sm:$0xf]
        %v1178 = vld [vmem:[%s3 + $0x34] sm:$0xf]
        %v1179 = vld [vmem:[%s3 + $0x38] sm:$0xf]
        %v1180 = vld [vmem:[%s3 + $0x3c] sm:$0xf]
        %v1185 = vunpack.c.l.b16 %v1177
        %v1186 = vunpack.c.l.b16 %v1178
        %v1187 = vunpack.c.l.b16 %v1179
        %v1188 = vunpack.c.l.b16 %v1180
        %v1189 = vpack.c.b16 %v1186, %v1185
        %v1190 = vpack.c.b16 %v1188, %v1187
        %v1194 = vsel %vm492, %v1176, 0
        %1196 = vmatprep.subr.bf16.mxu0 0
        %1197 = vmatpush1.bf16.msra.mxu0 %v1189
        %1198 = vmatprep.subr.bf16.mxu0 0
        %1199 = vmatpush1.bf16.msra.mxu0 %v1190
        %1200 = vmatprep.subr.bf16.mxu0 0
        %1201 = vmatpush1.bf16.msra.mxu0 0
        %1202 = vmatprep.subr.bf16.mxu0 0
        %1203 = vmatpush1.bf16.msra.mxu0 0
        %1204 = vmatprep.subr.bf16.mxu0 0
        %1205 = vmatpush1.bf16.msra.mxu0 0
        %1206 = vmatprep.subr.bf16.mxu0 0
        %1207 = vmatpush1.bf16.msra.mxu0 0
        %1208 = vmatprep.subr.bf16.mxu0 0
        %1209 = vmatpush1.bf16.msra.mxu0 0
        %1210 = vmatprep.subr.bf16.mxu0 0
        %1211 = vmatpush1.bf16.msra.mxu0 0
        %1212 = vmatprep.subr.bf16.mxu0 0
        %1213 = vmatpush1.bf16.msra.mxu0 0
        %1214 = vmatprep.subr.bf16.mxu0 0
        %1215 = vmatpush1.bf16.msra.mxu0 0
        %1216 = vmatprep.subr.bf16.mxu0 0
        %1217 = vmatpush1.bf16.msra.mxu0 0
        %1218 = vmatprep.subr.bf16.mxu0 0
        %1219 = vmatpush1.bf16.msra.mxu0 0
        %1220 = vmatprep.subr.bf16.mxu0 0
        %1221 = vmatpush1.bf16.msra.mxu0 0
        %1222 = vmatprep.subr.bf16.mxu0 0
        %1223 = vmatpush1.bf16.msra.mxu0 0
        %1224 = vmatprep.subr.bf16.mxu0 0
        %1225 = vmatpush1.bf16.msra.mxu0 0
        %1226 = vmatprep.subr.bf16.mxu0 0
        %1227 = vmatpush1.bf16.msra.mxu0 0
        %1228 = vmatprep.mubr.bf16.mxu0 0
        %1229 = vmatmul.mubr.bf16.gmra.mrb[0].mxu0 %v1194
        %v1230 = vpop.f32.mrb[0].mxu0
        %v1231 = vadd.f32 0.0, %v1230
        %v1232 = vpop.f32.mrb[0].mxu0
        %v1233 = vpop.f32.mrb[0].mxu0
        %v1234 = vadd.f32 0.0, %v1233
        %v1235 = vpop.f32.mrb[0].mxu0
        %1236 = vdwg.mxu0
        %v1237 = vadd.f32 %v1049, %v1231
        %v1238 = vadd.f32 %v1050, %v1234
        %v1239 = vmul.f32 %v1126, 0.25
        %v1240 = vmul.f32 %v1127, 0.25
        %1241 = vst.msk [vmem:[%s462] sm:$0xff] %vm540, %v1239
        %1242 = vst.msk [vmem:[%s462 + $0x8] sm:$0xff] %vm540, %v1240
        %v1243 = vld [vmem:[%s4] sm:$0x1]
        %v1245 = vlaneseq
        %v1246 = vshrl.u32 %v1245, 7
        %v1247 = vsub.s32 0, %v1246
        %v1248 = vrot.slane %v1243, %v1247
        %v1250 = vadd.f32 %v1237, %v1248
        %v1251 = vadd.f32 %v1238, %v1248
        %1252 = vst [vmem:[%s472] sm:$0xff] %v1250
        %1253 = vst [vmem:[%s472 + $0x8] sm:$0xff] %v1251
        %s1254 = smul.u32 2, %s26
        %p1255 = scmp.lt.s32.totalorder %s25, 1
        %s1256 = scalar_select %p1255, %s25, 1
        %p1257 = scmp.lt.s32.totalorder %s1254, 1
        %s1258 = scalar_select %p1257, %s1254, 1
        %s1259 = smul.addr %s1256, 2
        %s1260 = sadd.s32 %s1258, %s1259
        %s1261 = smul.addr %s1260, 8
        %s1262 = scalar_lea.vmem %s5, %s1261
        %s1263 = sand.u32 %s193, 1
        %s1264 = scalar_lea.sflag [#allocation6], %s1263
        %s1265 = sand.u32 %s193, 1
        %s1266 = smul.addr %s1265, 16
        %s1267 = scalar_lea.vmem [#allocation5], %s1266
        // Predicated region
        $region164: #{multihead_attention_forward.3} parent=150 // pred_check
          %p1268 = pneg %p175
        $region165: #{multihead_attention_forward.3} parent=150 // pred_check_branch
          %1270 = sbr.rel (%p1268) target = $region167
        $region166: #{multihead_attention_forward.3} parent=150 // pred_region
          %s1271 = smul.u32 2, %s26
        $region167: #{multihead_attention_forward.3} parent=150 // pred_fallthru
          _
        // Predicated region
        $region168: #{multihead_attention_forward.3} parent=150 // pred_check
          %p1272 = pneg %p203
        $region169: #{multihead_attention_forward.3} parent=150 // pred_check_branch
          %1274 = sbr.rel (%p1272) target = $region171
        $region170: #{multihead_attention_forward.3} parent=150 // pred_region
          %s1275 = smul.u32 2, %s26
          %s1277 = ssub.s32 256, 256
          %1278 = vsyncadd %s1264, %s1277
          %s1279 = smul.addr %s25, 2
          %s1280 = sadd.s32 %s1275, %s1279
          %s1281 = smul.addr %s1280, 128
          %s1282 = scalar_lea.hbm %s6, %s1281
          %s1283 = sshll.u32 %s1267, 4
          %s1284 = int_to_ptr.vmem [resolvable:$true] %s1283
          %1289 = dma.vmem_to_hbm [thread:$0]  %s1284, 256, %s1282, %s1264, 128, 128, 8
        $region171: #{multihead_attention_forward.3} parent=150 // pred_fallthru
          _
      $region151: #{multihead_attention_forward.3} parent=5 // pred_fallthru
        _
      %p1290 = scmp.le.s32.totalorder 2, %s16
      // Predicated region
      $region172: #{multihead_attention_forward.3} parent=5 // pred_check
        %p1291 = pneg %p1290
      $region173: #{multihead_attention_forward.3} parent=5 // pred_check_branch
        %1293 = sbr.rel (%p1291) target = $region175
      $region174: #{multihead_attention_forward.3} parent=5 // pred_region
        %s1294 = ssub.s32 %s16, 2
        // Predicated region
        $region176: #{multihead_attention_forward.3} parent=174 // pred_check
          %p1295 = pneg %p181
        $region177: #{multihead_attention_forward.3} parent=174 // pred_check_branch
          %1297 = sbr.rel (%p1295) target = $region179
        $region178: #{multihead_attention_forward.3} parent=174 // pred_region
          %s1298 = smul.u32 2, %s28
          %p1299 = scmp.lt.s32.totalorder %s27, 1
          %s1300 = scalar_select %p1299, %s27, 1
          %p1301 = scmp.lt.s32.totalorder %s1298, 1
          %s1302 = scalar_select %p1301, %s1298, 1
          %s1303 = smul.addr %s1300, 2
          %s1304 = sadd.s32 %s1302, %s1303
          %s1305 = smul.addr %s1304, 8
          %s1306 = scalar_lea.vmem %s5, %s1305
        $region179: #{multihead_attention_forward.3} parent=174 // pred_fallthru
          _
        // Predicated region
        $region180: #{multihead_attention_forward.3} parent=174 // pred_check
          %p1307 = pneg %p209
        $region181: #{multihead_attention_forward.3} parent=174 // pred_check_branch
          %1309 = sbr.rel (%p1307) target = $region183
        $region182: #{multihead_attention_forward.3} parent=174 // pred_region
          %s1310 = sand.u32 %s194, 1
          %s1311 = scalar_lea.sflag [#allocation6], %s1310
          %s1312 = sand.u32 %s194, 1
          %s1313 = smul.addr %s1312, 16
          %s1314 = scalar_lea.vmem [#allocation5], %s1313
          %1315 = dma.done %s1311, 256
        $region183: #{multihead_attention_forward.3} parent=174 // pred_fallthru
          _
      $region175: #{multihead_attention_forward.3} parent=5 // pred_fallthru
        _
    $region6: #{multihead_attention_forward.3} parent=1 // loop_footer
      %s20 = sadd.s32 1, %s16
    $region7: #{multihead_attention_forward.3} parent=1 // loop_footer_branch
      %15 = sbr.rel target = $region3
    $region8: #{multihead_attention_forward.3} parent=1 // loop_exit
      _
    %1316 = vsyncpa [#allocation6], 1
    %s1317 = scalar_lea.sflag [#allocation6], 1
    %1318 = vsyncpa %s1317, 1

</llo_original>
